<compile_context>
chip_gen: v7x
topology: tpu7x:2x2x1
jax: 0.10.0
libtpu: 0.0.40
codegen_flags: <defaults>
</compile_context>

<pallas_src>
import jax
import jax.numpy as jnp
from jax.experimental import pallas as pl
from jax.experimental.pallas import tpu as pltpu


def _round_up(x, m):
    return (x + m - 1) // m * m


# ---------------------------------------------------------------------------
# Fused kernel: per-chunk input projection GEMM + unrolled LSTM recurrence
# + classifier head on the final chunk.
# ---------------------------------------------------------------------------
def _make_lstm_kernel(T, TB, Hp, seq_len, needs_mask, cdtype):
    def kernel(x_ref, wih_ref, b_ref, whh_ref, wout_ref, bout_ref, out_ref,
               xp_sc, h_sc, c_sc):
        c_idx = pl.program_id(1)

        @pl.when(c_idx == 0)
        def _init():
            h_sc[...] = jnp.zeros_like(h_sc)
            c_sc[...] = jnp.zeros_like(c_sc)

        # Chunk-wide hoisted input projection: one MXU GEMM over T*TB rows.
        # Bias folded in; result lives only in VMEM scratch (never HBM).
        xp_sc[...] = (
            jnp.dot(x_ref[...], wih_ref[...],
                    preferred_element_type=jnp.float32)
            + b_ref[...]
        )

        h = h_sc[...]
        c = c_sc[...]
        base = c_idx * T
        # Fully unrolled chunk loop: the only serial work per time step is
        # h @ W_hh^T plus gate nonlinearities / cell update, which lets the
        # scheduler overlap MXU, EUP and VPU slots.
        for i in range(T):
            gates = xp_sc[pl.ds(i * TB, TB), :] + jnp.dot(
                h.astype(cdtype), whh_ref[...],
                preferred_element_type=jnp.float32)        # (TB, 4Hp) f32
            # Lane-aligned gate slices (Hp % 128 == 0). PyTorch order i,f,g,o.
            i_g = jax.nn.sigmoid(gates[:, 0 * Hp:1 * Hp])
            f_g = jax.nn.sigmoid(gates[:, 1 * Hp:2 * Hp])
            g_g = jnp.tanh(gates[:, 2 * Hp:3 * Hp])
            o_g = jax.nn.sigmoid(gates[:, 3 * Hp:4 * Hp])
            c_new = f_g * c + i_g * g_g
            h_new = o_g * jnp.tanh(c_new)
            if needs_mask:
                # Padded tail time steps must not update the state.
                valid = (base + i) < seq_len
                h = jnp.where(valid, h_new, h)
                c = jnp.where(valid, c_new, c)
            else:
                h, c = h_new, c_new
        h_sc[...] = h
        c_sc[...] = c

        @pl.when(c_idx == pl.num_programs(1) - 1)
        def _final():
            out_ref[...] = (
                jnp.dot(h.astype(cdtype), wout_ref[...],
                        preferred_element_type=jnp.float32)
                + bout_ref[...]
            ).astype(out_ref.dtype)

    return kernel


def classifier_forward(token_ids, emb_w, w_ih, w_hh, b_ih, b_hh, w_out, b_out,
                       *, time_chunk=32, batch_block=None,
                       compute_dtype=jnp.bfloat16):
    """Forward pass matching ClassifierModel.forward.

    token_ids: (B, S) int32
    emb_w    : (V, E)      nn.Embedding weight
    w_ih     : (4H, E)     lstm.weight_ih_l0 (gate order i, f, g, o)
    w_hh     : (4H, H)     lstm.weight_hh_l0
    b_ih,b_hh: (4H,)
    w_out    : (O, H)      label.weight
    b_out    : (O,)
    returns  : (B, O) float32 logits

    compute_dtype: dtype of MXU matmul operands. Accumulation, gate math and
    the h/c state are always float32.
    """
    B, S = token_ids.shape
    E = emb_w.shape[1]
    H = w_hh.shape[1]
    O = w_out.shape[0]
    cdtype = compute_dtype

    # Lane-aligned padded sizes.
    Hp = _round_up(H, 128)
    Op = _round_up(O, 128)
    G = 4 * Hp

    # Sequence chunking: prefer a chunk that divides S (kills tail masking).
    T = min(int(time_chunk), S)
    if S % T != 0:
        d = 1
        for cand in range(T, 0, -1):
            if S % cand == 0:
                d = cand
                break
        if 2 * d >= T:
            T = d
    S_pad = _round_up(S, T)
    nc = S_pad // T
    needs_mask = S_pad != S

    # Sublane-aligned batch. Default: no batch split — the "parallel" axis is
    # a serial loop on single-TC chips.  Pass batch_block explicitly (e.g.
    # B//2) to shard across v7x megacore TensorCores.
    B_pad = _round_up(B, 8)
    if batch_block is None:
        batch_block = B_pad
    TB = int(batch_block)
    assert B_pad % TB == 0 and TB % 8 == 0, (B_pad, TB)
    nb = B_pad // TB

    # ---- host-side parameter packing (gate-major, transposed, padded) -----
    w_ih = jnp.asarray(w_ih, jnp.float32)
    w_hh = jnp.asarray(w_hh, jnp.float32)
    w_out = jnp.asarray(w_out, jnp.float32)
    b_all = jnp.asarray(b_ih, jnp.float32) + jnp.asarray(b_hh, jnp.float32)

    wih4 = jnp.pad(w_ih.reshape(4, H, E), ((0, 0), (0, Hp - H), (0, 0)))
    wih_t = jnp.transpose(wih4, (2, 0, 1)).reshape(E, G).astype(cdtype)

    whh4 = jnp.pad(w_hh.reshape(4, H, H), ((0, 0), (0, Hp - H), (0, Hp - H)))
    whh_t = jnp.transpose(whh4, (2, 0, 1)).reshape(Hp, G).astype(cdtype)

    bias = jnp.pad(b_all.reshape(4, H), ((0, 0), (0, Hp - H))).reshape(1, G)

    wout_t = jnp.transpose(
        jnp.pad(w_out, ((0, Op - O), (0, Hp - H)))).astype(cdtype)   # (Hp, Op)
    bout = jnp.pad(jnp.asarray(b_out, jnp.float32), (0, Op - O)).reshape(1, Op)

    # ---- embedding gather, time-major, directly in compute_dtype ----------
    x = jnp.take(jnp.asarray(emb_w, cdtype), token_ids.T, axis=0)   # (S,B,E)
    x = jnp.pad(x, ((0, S_pad - S), (0, B_pad - B), (0, 0)))
    # Dense per-batch-block layout: (nb, S_pad*TB, E); each (T*TB, E) chunk
    # DMA is a contiguous slab even when the batch is split.
    x = x.reshape(S_pad, nb, TB, E).transpose(1, 0, 2, 3).reshape(
        nb, S_pad * TB, E)

    kernel = _make_lstm_kernel(T, TB, Hp, S, needs_mask, cdtype)
    out = pl.pallas_call(
        kernel,
        out_shape=jax.ShapeDtypeStruct((B_pad, Op), jnp.float32),
        grid_spec=pltpu.PrefetchScalarGridSpec(
            num_scalar_prefetch=0,
            grid=(nb, nc),                        # sequence axis innermost
            in_specs=[
                pl.BlockSpec((None, T * TB, E), lambda b, c: (b, c, 0)),
                # Constant-index weights: DMA'd once, resident in VMEM.
                pl.BlockSpec((E, G), lambda b, c: (0, 0)),
                pl.BlockSpec((1, G), lambda b, c: (0, 0)),
                pl.BlockSpec((Hp, G), lambda b, c: (0, 0)),
                pl.BlockSpec((Hp, Op), lambda b, c: (0, 0)),
                pl.BlockSpec((1, Op), lambda b, c: (0, 0)),
            ],
            out_specs=pl.BlockSpec((TB, Op), lambda b, c: (b, 0)),
            scratch_shapes=[
                pltpu.VMEM((T * TB, G), jnp.float32),   # chunk gate pre-acts
                pltpu.VMEM((TB, Hp), jnp.float32),      # h state
                pltpu.VMEM((TB, Hp), jnp.float32),      # c state
            ],
        ),
        compiler_params=pltpu.CompilerParams(
            dimension_semantics=("parallel", "arbitrary"),
            vmem_limit_bytes=32 * 1024 * 1024),
    )(x, wih_t, bias, whh_t, wout_t, bout)

    return out[:B, :O]


# ---------------------------------------------------------------------------
# Pure-JAX reference mirroring torch.nn.LSTM + nn.Linear semantics.
# ---------------------------------------------------------------------------
def reference_forward(token_ids, emb_w, w_ih, w_hh, b_ih, b_hh, w_out, b_out):
    x = jnp.take(emb_w, token_ids, axis=0)                 # (B, S, E)
    x = jnp.transpose(x, (1, 0, 2)).astype(jnp.float32)    # (S, B, E)
    B = x.shape[1]
    H = w_hh.shape[1]

    def step(carry, x_t):
        h, c = carry
        gates = x_t @ w_ih.T + h @ w_hh.T + b_ih + b_hh
        i = jax.nn.sigmoid(gates[:, 0 * H:1 * H])
        f = jax.nn.sigmoid(gates[:, 1 * H:2 * H])
        g = jnp.tanh(gates[:, 2 * H:3 * H])
        o = jax.nn.sigmoid(gates[:, 3 * H:4 * H])
        c = f * c + i * g
        h = o * jnp.tanh(c)
        return (h, c), None

    h0 = jnp.zeros((B, H), jnp.float32)
    c0 = jnp.zeros((B, H), jnp.float32)
    (h_fin, _), _ = jax.lax.scan(step, (h0, c0), x)
    return h_fin @ w_out.T + b_out


if __name__ == "__main__":
    batch_size = 2
    seq_len = 8
    vocab_size = 50
    embedding_length = 32
    hidden_size = 32
    output_size = 11

    key = jax.random.PRNGKey(0)
    k = jax.random.split(key, 10)

    token_ids = jax.random.randint(k[0], (batch_size, seq_len), 0, vocab_size,
                                   dtype=jnp.int32)
    emb_w = jax.random.normal(k[1], (vocab_size, embedding_length),
                              jnp.float32) * 0.1
    w_ih = jax.random.normal(k[2], (4 * hidden_size, embedding_length),
                             jnp.float32) * 0.1
    w_hh = jax.random.normal(k[3], (4 * hidden_size, hidden_size),
                             jnp.float32) * 0.1
    b_ih = jax.random.normal(k[4], (4 * hidden_size,), jnp.float32) * 0.1
    b_hh = jax.random.normal(k[5], (4 * hidden_size,), jnp.float32) * 0.1
    w_out = jax.random.normal(k[6], (output_size, hidden_size),
                              jnp.float32) * 0.1
    b_out = jax.random.normal(k[7], (output_size,), jnp.float32) * 0.1

    params = (emb_w, w_ih, w_hh, b_ih, b_hh, w_out, b_out)
    ref = reference_forward(token_ids, *params)

    # 1) f32 matmuls, single chunk (T == S).
    out_f32 = jax.block_until_ready(
        classifier_forward(token_ids, *params, time_chunk=8,
                           compute_dtype=jnp.float32))
    assert out_f32.shape == (batch_size, output_size)
    err = float(jnp.max(jnp.abs(out_f32 - ref)))
    assert err < 1e-3, f"f32 mismatch: max abs err {err}"

    # 2) bf16 matmul operands, multi-chunk (time_chunk=3 -> divisor T=2).
    out_bf16 = jax.block_until_ready(
        classifier_forward(token_ids, *params, time_chunk=3,
                           compute_dtype=jnp.bfloat16))
    err = float(jnp.max(jnp.abs(out_bf16 - ref)))
    assert err < 5e-2, f"bf16 mismatch: max abs err {err}"

    # 3) Larger batch with explicit megacore-style batch split and a prime
    #    sequence length so the masked-tail path is exercised.
    tok_big = jax.random.randint(k[8], (32, 19), 0, vocab_size,
                                 dtype=jnp.int32)
    ref_big = reference_forward(tok_big, *params)
    out_big = jax.block_until_ready(
        classifier_forward(tok_big, *params, time_chunk=8, batch_block=16,
                           compute_dtype=jnp.float32))
    err = float(jnp.max(jnp.abs(out_big - ref_big)))
    assert err < 1e-3, f"batch-split / masked-tail mismatch: max abs err {err}"

    print("KERNEL_OK")
</pallas_src>

<mosaic_0001>
module attributes {stable_mosaic.version = 11 : i64} {
  func.func @kernel(%arg0: i32, %arg1: i32, %arg2: memref<1x64x32xf32, #tpu.memory_space<vmem>>, %arg3: memref<32x512xf32, #tpu.memory_space<vmem>>, %arg4: memref<1x512xf32, #tpu.memory_space<vmem>>, %arg5: memref<128x512xf32, #tpu.memory_space<vmem>>, %arg6: memref<128x128xf32, #tpu.memory_space<vmem>>, %arg7: memref<1x128xf32, #tpu.memory_space<vmem>>, %arg8: memref<8x128xf32, #tpu.memory_space<vmem>>, %arg9: memref<64x512xf32, #tpu.memory_space<vmem>>, %arg10: memref<8x128xf32, #tpu.memory_space<vmem>>, %arg11: memref<8x128xf32, #tpu.memory_space<vmem>>) attributes {dimension_semantics = [#tpu.dimension_semantics<parallel>, #tpu.dimension_semantics<arbitrary>], iteration_bounds = array<i64: 1, 1>, scalar_prefetch = 0 : i64, scratch_operands = 3 : i64, tpu.core_type = #tpu.core_type<tc>, window_params = [{transform_indices = @transform_0, window_bounds = array<i64: 1, 64, 32>}, {pipeline_mode = #tpu.pipeline_mode<synchronous>, transform_indices = @transform_1, window_bounds = array<i64: 32, 512>}, {pipeline_mode = #tpu.pipeline_mode<synchronous>, transform_indices = @transform_2, window_bounds = array<i64: 1, 512>}, {pipeline_mode = #tpu.pipeline_mode<synchronous>, transform_indices = @transform_3, window_bounds = array<i64: 128, 512>}, {pipeline_mode = #tpu.pipeline_mode<synchronous>, transform_indices = @transform_4, window_bounds = array<i64: 128, 128>}, {pipeline_mode = #tpu.pipeline_mode<synchronous>, transform_indices = @transform_5, window_bounds = array<i64: 1, 128>}, {transform_indices = @transform_6, window_bounds = array<i64: 8, 128>}]} {
    %c0_i32 = arith.constant 0 : i32
    %0 = arith.cmpi eq, %arg1, %c0_i32 : i32
    %1 = arith.extui %0 : i1 to i32
    %c0_i32_0 = arith.constant 0 : i32
    %2 = arith.cmpi ne, %1, %c0_i32_0 : i32
    scf.if %2 {
      %cst_76 = arith.constant 0.000000e+00 : f32
      %250 = vector.broadcast %cst_76 : f32 to vector<8x128xf32>
      %c0_77 = arith.constant 0 : index
      %c0_78 = arith.constant 0 : index
      %251 = vector.load %arg10[%c0_77, %c0_78] : memref<8x128xf32, #tpu.memory_space<vmem>>, vector<8x128xf32>
      tpu.vector_store %arg10[%c0_77, %c0_78], %250 {strides = array<i32>} : memref<8x128xf32, #tpu.memory_space<vmem>>, vector<8x128xf32>,
      %cst_79 = arith.constant 0.000000e+00 : f32
      %252 = vector.broadcast %cst_79 : f32 to vector<8x128xf32>
      %c0_80 = arith.constant 0 : index
      %c0_81 = arith.constant 0 : index
      %253 = vector.load %arg11[%c0_80, %c0_81] : memref<8x128xf32, #tpu.memory_space<vmem>>, vector<8x128xf32>
      tpu.vector_store %arg11[%c0_80, %c0_81], %252 {strides = array<i32>} : memref<8x128xf32, #tpu.memory_space<vmem>>, vector<8x128xf32>,
    } else {
    }
    %c0 = arith.constant 0 : index
    %c0_1 = arith.constant 0 : index
    %c0_2 = arith.constant 0 : index
    %3 = vector.load %arg2[%c0, %c0_1, %c0_2] : memref<1x64x32xf32, #tpu.memory_space<vmem>>, vector<1x64x32xf32>
    %4 = vector.shape_cast %3 : vector<1x64x32xf32> to vector<64x32xf32>
    %c0_3 = arith.constant 0 : index
    %c0_4 = arith.constant 0 : index
    %5 = vector.load %arg3[%c0_3, %c0_4] : memref<32x512xf32, #tpu.memory_space<vmem>>, vector<32x512xf32>
    %cst = arith.constant dense<0.000000e+00> : vector<64x512xf32>
    %6 = tpu.matmul %4, %5, %cst {dimension_numbers = #tpu.dot_dimension_numbers<[1], [0], [0], [1], [0, 0, 1, 1], [], []>} : vector<64x32xf32>, vector<32x512xf32>, vector<64x512xf32> -> vector<64x512xf32>
    %c0_5 = arith.constant 0 : index
    %c0_6 = arith.constant 0 : index
    %7 = vector.load %arg4[%c0_5, %c0_6] : memref<1x512xf32, #tpu.memory_space<vmem>>, vector<1x512xf32>
    %8 = vector.broadcast %7 : vector<1x512xf32> to vector<64x512xf32>
    %9 = arith.addf %6, %8 : vector<64x512xf32>
    %c0_7 = arith.constant 0 : index
    %c0_8 = arith.constant 0 : index
    %10 = vector.load %arg9[%c0_7, %c0_8] : memref<64x512xf32, #tpu.memory_space<vmem>>, vector<64x512xf32>
    tpu.vector_store %arg9[%c0_7, %c0_8], %9 {strides = array<i32>} : memref<64x512xf32, #tpu.memory_space<vmem>>, vector<64x512xf32>,
    %c0_9 = arith.constant 0 : index
    %c0_10 = arith.constant 0 : index
    %11 = vector.load %arg10[%c0_9, %c0_10] : memref<8x128xf32, #tpu.memory_space<vmem>>, vector<8x128xf32>
    %c0_11 = arith.constant 0 : index
    %c0_12 = arith.constant 0 : index
    %12 = vector.load %arg11[%c0_11, %c0_12] : memref<8x128xf32, #tpu.memory_space<vmem>>, vector<8x128xf32>
    %c0_13 = arith.constant 0 : index
    %c0_14 = arith.constant 0 : index
    %13 = vector.load %arg9[%c0_13, %c0_14] : memref<64x512xf32, #tpu.memory_space<vmem>>, vector<8x512xf32>
    %c0_15 = arith.constant 0 : index
    %c0_16 = arith.constant 0 : index
    %14 = vector.load %arg5[%c0_15, %c0_16] : memref<128x512xf32, #tpu.memory_space<vmem>>, vector<128x512xf32>
    %cst_17 = arith.constant dense<0.000000e+00> : vector<8x512xf32>
    %15 = tpu.matmul %11, %14, %cst_17 {dimension_numbers = #tpu.dot_dimension_numbers<[1], [0], [0], [1], [0, 0, 1, 1], [], []>} : vector<8x128xf32>, vector<128x512xf32>, vector<8x512xf32> -> vector<8x512xf32>
    %16 = arith.addf %13, %15 : vector<8x512xf32>
    %17 = vector.extract_strided_slice %16 {offsets = [0, 0], sizes = [8, 128], strides = [1, 1]} : vector<8x512xf32> to vector<8x128xf32>
    %18 = arith.negf %17 : vector<8x128xf32>
    %19 = math.exp %18 : vector<8x128xf32>
    %cst_18 = arith.constant 1.000000e+00 : f32
    %20 = vector.broadcast %cst_18 : f32 to vector<8x128xf32>
    %21 = arith.addf %20, %19 : vector<8x128xf32>
    %22 = arith.divf %20, %21 : vector<8x128xf32>
    %23 = vector.extract_strided_slice %16 {offsets = [0, 128], sizes = [8, 128], strides = [1, 1]} : vector<8x512xf32> to vector<8x128xf32>
    %24 = arith.negf %23 : vector<8x128xf32>
    %25 = math.exp %24 : vector<8x128xf32>
    %cst_19 = arith.constant 1.000000e+00 : f32
    %26 = vector.broadcast %cst_19 : f32 to vector<8x128xf32>
    %27 = arith.addf %26, %25 : vector<8x128xf32>
    %28 = arith.divf %26, %27 : vector<8x128xf32>
    %29 = vector.extract_strided_slice %16 {offsets = [0, 256], sizes = [8, 128], strides = [1, 1]} : vector<8x512xf32> to vector<8x128xf32>
    %30 = math.tanh %29 : vector<8x128xf32>
    %31 = vector.extract_strided_slice %16 {offsets = [0, 384], sizes = [8, 128], strides = [1, 1]} : vector<8x512xf32> to vector<8x128xf32>
    %32 = arith.negf %31 : vector<8x128xf32>
    %33 = math.exp %32 : vector<8x128xf32>
    %cst_20 = arith.constant 1.000000e+00 : f32
    %34 = vector.broadcast %cst_20 : f32 to vector<8x128xf32>
    %35 = arith.addf %34, %33 : vector<8x128xf32>
    %36 = arith.divf %34, %35 : vector<8x128xf32>
    %37 = arith.mulf %28, %12 : vector<8x128xf32>
    %38 = arith.mulf %22, %30 : vector<8x128xf32>
    %39 = arith.addf %37, %38 : vector<8x128xf32>
    %40 = math.tanh %39 : vector<8x128xf32>
    %41 = arith.mulf %36, %40 : vector<8x128xf32>
    %c8 = arith.constant 8 : index
    %c0_21 = arith.constant 0 : index
    %42 = vector.load %arg9[%c8, %c0_21] : memref<64x512xf32, #tpu.memory_space<vmem>>, vector<8x512xf32>
    %c0_22 = arith.constant 0 : index
    %c0_23 = arith.constant 0 : index
    %43 = vector.load %arg5[%c0_22, %c0_23] : memref<128x512xf32, #tpu.memory_space<vmem>>, vector<128x512xf32>
    %cst_24 = arith.constant dense<0.000000e+00> : vector<8x512xf32>
    %44 = tpu.matmul %41, %43, %cst_24 {dimension_numbers = #tpu.dot_dimension_numbers<[1], [0], [0], [1], [0, 0, 1, 1], [], []>} : vector<8x128xf32>, vector<128x512xf32>, vector<8x512xf32> -> vector<8x512xf32>
    %45 = arith.addf %42, %44 : vector<8x512xf32>
    %46 = vector.extract_strided_slice %45 {offsets = [0, 0], sizes = [8, 128], strides = [1, 1]} : vector<8x512xf32> to vector<8x128xf32>
    %47 = arith.negf %46 : vector<8x128xf32>
    %48 = math.exp %47 : vector<8x128xf32>
    %cst_25 = arith.constant 1.000000e+00 : f32
    %49 = vector.broadcast %cst_25 : f32 to vector<8x128xf32>
    %50 = arith.addf %49, %48 : vector<8x128xf32>
    %51 = arith.divf %49, %50 : vector<8x128xf32>
    %52 = vector.extract_strided_slice %45 {offsets = [0, 128], sizes = [8, 128], strides = [1, 1]} : vector<8x512xf32> to vector<8x128xf32>
    %53 = arith.negf %52 : vector<8x128xf32>
    %54 = math.exp %53 : vector<8x128xf32>
    %cst_26 = arith.constant 1.000000e+00 : f32
    %55 = vector.broadcast %cst_26 : f32 to vector<8x128xf32>
    %56 = arith.addf %55, %54 : vector<8x128xf32>
    %57 = arith.divf %55, %56 : vector<8x128xf32>
    %58 = vector.extract_strided_slice %45 {offsets = [0, 256], sizes = [8, 128], strides = [1, 1]} : vector<8x512xf32> to vector<8x128xf32>
    %59 = math.tanh %58 : vector<8x128xf32>
    %60 = vector.extract_strided_slice %45 {offsets = [0, 384], sizes = [8, 128], strides = [1, 1]} : vector<8x512xf32> to vector<8x128xf32>
    %61 = arith.negf %60 : vector<8x128xf32>
    %62 = math.exp %61 : vector<8x128xf32>
    %cst_27 = arith.constant 1.000000e+00 : f32
    %63 = vector.broadcast %cst_27 : f32 to vector<8x128xf32>
    %64 = arith.addf %63, %62 : vector<8x128xf32>
    %65 = arith.divf %63, %64 : vector<8x128xf32>
    %66 = arith.mulf %57, %39 : vector<8x128xf32>
    %67 = arith.mulf %51, %59 : vector<8x128xf32>
    %68 = arith.addf %66, %67 : vector<8x128xf32>
    %69 = math.tanh %68 : vector<8x128xf32>
    %70 = arith.mulf %65, %69 : vector<8x128xf32>
    %c16 = arith.constant 16 : index
    %c0_28 = arith.constant 0 : index
    %71 = vector.load %arg9[%c16, %c0_28] : memref<64x512xf32, #tpu.memory_space<vmem>>, vector<8x512xf32>
    %c0_29 = arith.constant 0 : index
    %c0_30 = arith.constant 0 : index
    %72 = vector.load %arg5[%c0_29, %c0_30] : memref<128x512xf32, #tpu.memory_space<vmem>>, vector<128x512xf32>
    %cst_31 = arith.constant dense<0.000000e+00> : vector<8x512xf32>
    %73 = tpu.matmul %70, %72, %cst_31 {dimension_numbers = #tpu.dot_dimension_numbers<[1], [0], [0], [1], [0, 0, 1, 1], [], []>} : vector<8x128xf32>, vector<128x512xf32>, vector<8x512xf32> -> vector<8x512xf32>
    %74 = arith.addf %71, %73 : vector<8x512xf32>
    %75 = vector.extract_strided_slice %74 {offsets = [0, 0], sizes = [8, 128], strides = [1, 1]} : vector<8x512xf32> to vector<8x128xf32>
    %76 = arith.negf %75 : vector<8x128xf32>
    %77 = math.exp %76 : vector<8x128xf32>
    %cst_32 = arith.constant 1.000000e+00 : f32
    %78 = vector.broadcast %cst_32 : f32 to vector<8x128xf32>
    %79 = arith.addf %78, %77 : vector<8x128xf32>
    %80 = arith.divf %78, %79 : vector<8x128xf32>
    %81 = vector.extract_strided_slice %74 {offsets = [0, 128], sizes = [8, 128], strides = [1, 1]} : vector<8x512xf32> to vector<8x128xf32>
    %82 = arith.negf %81 : vector<8x128xf32>
    %83 = math.exp %82 : vector<8x128xf32>
    %cst_33 = arith.constant 1.000000e+00 : f32
    %84 = vector.broadcast %cst_33 : f32 to vector<8x128xf32>
    %85 = arith.addf %84, %83 : vector<8x128xf32>
    %86 = arith.divf %84, %85 : vector<8x128xf32>
    %87 = vector.extract_strided_slice %74 {offsets = [0, 256], sizes = [8, 128], strides = [1, 1]} : vector<8x512xf32> to vector<8x128xf32>
    %88 = math.tanh %87 : vector<8x128xf32>
    %89 = vector.extract_strided_slice %74 {offsets = [0, 384], sizes = [8, 128], strides = [1, 1]} : vector<8x512xf32> to vector<8x128xf32>
    %90 = arith.negf %89 : vector<8x128xf32>
    %91 = math.exp %90 : vector<8x128xf32>
    %cst_34 = arith.constant 1.000000e+00 : f32
    %92 = vector.broadcast %cst_34 : f32 to vector<8x128xf32>
    %93 = arith.addf %92, %91 : vector<8x128xf32>
    %94 = arith.divf %92, %93 : vector<8x128xf32>
    %95 = arith.mulf %86, %68 : vector<8x128xf32>
    %96 = arith.mulf %80, %88 : vector<8x128xf32>
    %97 = arith.addf %95, %96 : vector<8x128xf32>
    %98 = math.tanh %97 : vector<8x128xf32>
    %99 = arith.mulf %94, %98 : vector<8x128xf32>
    %c24 = arith.constant 24 : index
    %c0_35 = arith.constant 0 : index
    %100 = vector.load %arg9[%c24, %c0_35] : memref<64x512xf32, #tpu.memory_space<vmem>>, vector<8x512xf32>
    %c0_36 = arith.constant 0 : index
    %c0_37 = arith.constant 0 : index
    %101 = vector.load %arg5[%c0_36, %c0_37] : memref<128x512xf32, #tpu.memory_space<vmem>>, vector<128x512xf32>
    %cst_38 = arith.constant dense<0.000000e+00> : vector<8x512xf32>
    %102 = tpu.matmul %99, %101, %cst_38 {dimension_numbers = #tpu.dot_dimension_numbers<[1], [0], [0], [1], [0, 0, 1, 1], [], []>} : vector<8x128xf32>, vector<128x512xf32>, vector<8x512xf32> -> vector<8x512xf32>
    %103 = arith.addf %100, %102 : vector<8x512xf32>
    %104 = vector.extract_strided_slice %103 {offsets = [0, 0], sizes = [8, 128], strides = [1, 1]} : vector<8x512xf32> to vector<8x128xf32>
    %105 = arith.negf %104 : vector<8x128xf32>
    %106 = math.exp %105 : vector<8x128xf32>
    %cst_39 = arith.constant 1.000000e+00 : f32
    %107 = vector.broadcast %cst_39 : f32 to vector<8x128xf32>
    %108 = arith.addf %107, %106 : vector<8x128xf32>
    %109 = arith.divf %107, %108 : vector<8x128xf32>
    %110 = vector.extract_strided_slice %103 {offsets = [0, 128], sizes = [8, 128], strides = [1, 1]} : vector<8x512xf32> to vector<8x128xf32>
    %111 = arith.negf %110 : vector<8x128xf32>
    %112 = math.exp %111 : vector<8x128xf32>
    %cst_40 = arith.constant 1.000000e+00 : f32
    %113 = vector.broadcast %cst_40 : f32 to vector<8x128xf32>
    %114 = arith.addf %113, %112 : vector<8x128xf32>
    %115 = arith.divf %113, %114 : vector<8x128xf32>
    %116 = vector.extract_strided_slice %103 {offsets = [0, 256], sizes = [8, 128], strides = [1, 1]} : vector<8x512xf32> to vector<8x128xf32>
    %117 = math.tanh %116 : vector<8x128xf32>
    %118 = vector.extract_strided_slice %103 {offsets = [0, 384], sizes = [8, 128], strides = [1, 1]} : vector<8x512xf32> to vector<8x128xf32>
    %119 = arith.negf %118 : vector<8x128xf32>
    %120 = math.exp %119 : vector<8x128xf32>
    %cst_41 = arith.constant 1.000000e+00 : f32
    %121 = vector.broadcast %cst_41 : f32 to vector<8x128xf32>
    %122 = arith.addf %121, %120 : vector<8x128xf32>
    %123 = arith.divf %121, %122 : vector<8x128xf32>
    %124 = arith.mulf %115, %97 : vector<8x128xf32>
    %125 = arith.mulf %109, %117 : vector<8x128xf32>
    %126 = arith.addf %124, %125 : vector<8x128xf32>
    %127 = math.tanh %126 : vector<8x128xf32>
    %128 = arith.mulf %123, %127 : vector<8x128xf32>
    %c32 = arith.constant 32 : index
    %c0_42 = arith.constant 0 : index
    %129 = vector.load %arg9[%c32, %c0_42] : memref<64x512xf32, #tpu.memory_space<vmem>>, vector<8x512xf32>
    %c0_43 = arith.constant 0 : index
    %c0_44 = arith.constant 0 : index
    %130 = vector.load %arg5[%c0_43, %c0_44] : memref<128x512xf32, #tpu.memory_space<vmem>>, vector<128x512xf32>
    %cst_45 = arith.constant dense<0.000000e+00> : vector<8x512xf32>
    %131 = tpu.matmul %128, %130, %cst_45 {dimension_numbers = #tpu.dot_dimension_numbers<[1], [0], [0], [1], [0, 0, 1, 1], [], []>} : vector<8x128xf32>, vector<128x512xf32>, vector<8x512xf32> -> vector<8x512xf32>
    %132 = arith.addf %129, %131 : vector<8x512xf32>
    %133 = vector.extract_strided_slice %132 {offsets = [0, 0], sizes = [8, 128], strides = [1, 1]} : vector<8x512xf32> to vector<8x128xf32>
    %134 = arith.negf %133 : vector<8x128xf32>
    %135 = math.exp %134 : vector<8x128xf32>
    %cst_46 = arith.constant 1.000000e+00 : f32
    %136 = vector.broadcast %cst_46 : f32 to vector<8x128xf32>
    %137 = arith.addf %136, %135 : vector<8x128xf32>
    %138 = arith.divf %136, %137 : vector<8x128xf32>
    %139 = vector.extract_strided_slice %132 {offsets = [0, 128], sizes = [8, 128], strides = [1, 1]} : vector<8x512xf32> to vector<8x128xf32>
    %140 = arith.negf %139 : vector<8x128xf32>
    %141 = math.exp %140 : vector<8x128xf32>
    %cst_47 = arith.constant 1.000000e+00 : f32
    %142 = vector.broadcast %cst_47 : f32 to vector<8x128xf32>
    %143 = arith.addf %142, %141 : vector<8x128xf32>
    %144 = arith.divf %142, %143 : vector<8x128xf32>
    %145 = vector.extract_strided_slice %132 {offsets = [0, 256], sizes = [8, 128], strides = [1, 1]} : vector<8x512xf32> to vector<8x128xf32>
    %146 = math.tanh %145 : vector<8x128xf32>
    %147 = vector.extract_strided_slice %132 {offsets = [0, 384], sizes = [8, 128], strides = [1, 1]} : vector<8x512xf32> to vector<8x128xf32>
    %148 = arith.negf %147 : vector<8x128xf32>
    %149 = math.exp %148 : vector<8x128xf32>
    %cst_48 = arith.constant 1.000000e+00 : f32
    %150 = vector.broadcast %cst_48 : f32 to vector<8x128xf32>
    %151 = arith.addf %150, %149 : vector<8x128xf32>
    %152 = arith.divf %150, %151 : vector<8x128xf32>
    %153 = arith.mulf %144, %126 : vector<8x128xf32>
    %154 = arith.mulf %138, %146 : vector<8x128xf32>
    %155 = arith.addf %153, %154 : vector<8x128xf32>
    %156 = math.tanh %155 : vector<8x128xf32>
    %157 = arith.mulf %152, %156 : vector<8x128xf32>
    %c40 = arith.constant 40 : index
    %c0_49 = arith.constant 0 : index
    %158 = vector.load %arg9[%c40, %c0_49] : memref<64x512xf32, #tpu.memory_space<vmem>>, vector<8x512xf32>
    %c0_50 = arith.constant 0 : index
    %c0_51 = arith.constant 0 : index
    %159 = vector.load %arg5[%c0_50, %c0_51] : memref<128x512xf32, #tpu.memory_space<vmem>>, vector<128x512xf32>
    %cst_52 = arith.constant dense<0.000000e+00> : vector<8x512xf32>
    %160 = tpu.matmul %157, %159, %cst_52 {dimension_numbers = #tpu.dot_dimension_numbers<[1], [0], [0], [1], [0, 0, 1, 1], [], []>} : vector<8x128xf32>, vector<128x512xf32>, vector<8x512xf32> -> vector<8x512xf32>
    %161 = arith.addf %158, %160 : vector<8x512xf32>
    %162 = vector.extract_strided_slice %161 {offsets = [0, 0], sizes = [8, 128], strides = [1, 1]} : vector<8x512xf32> to vector<8x128xf32>
    %163 = arith.negf %162 : vector<8x128xf32>
    %164 = math.exp %163 : vector<8x128xf32>
    %cst_53 = arith.constant 1.000000e+00 : f32
    %165 = vector.broadcast %cst_53 : f32 to vector<8x128xf32>
    %166 = arith.addf %165, %164 : vector<8x128xf32>
    %167 = arith.divf %165, %166 : vector<8x128xf32>
    %168 = vector.extract_strided_slice %161 {offsets = [0, 128], sizes = [8, 128], strides = [1, 1]} : vector<8x512xf32> to vector<8x128xf32>
    %169 = arith.negf %168 : vector<8x128xf32>
    %170 = math.exp %169 : vector<8x128xf32>
    %cst_54 = arith.constant 1.000000e+00 : f32
    %171 = vector.broadcast %cst_54 : f32 to vector<8x128xf32>
    %172 = arith.addf %171, %170 : vector<8x128xf32>
    %173 = arith.divf %171, %172 : vector<8x128xf32>
    %174 = vector.extract_strided_slice %161 {offsets = [0, 256], sizes = [8, 128], strides = [1, 1]} : vector<8x512xf32> to vector<8x128xf32>
    %175 = math.tanh %174 : vector<8x128xf32>
    %176 = vector.extract_strided_slice %161 {offsets = [0, 384], sizes = [8, 128], strides = [1, 1]} : vector<8x512xf32> to vector<8x128xf32>
    %177 = arith.negf %176 : vector<8x128xf32>
    %178 = math.exp %177 : vector<8x128xf32>
    %cst_55 = arith.constant 1.000000e+00 : f32
    %179 = vector.broadcast %cst_55 : f32 to vector<8x128xf32>
    %180 = arith.addf %179, %178 : vector<8x128xf32>
    %181 = arith.divf %179, %180 : vector<8x128xf32>
    %182 = arith.mulf %173, %155 : vector<8x128xf32>
    %183 = arith.mulf %167, %175 : vector<8x128xf32>
    %184 = arith.addf %182, %183 : vector<8x128xf32>
    %185 = math.tanh %184 : vector<8x128xf32>
    %186 = arith.mulf %181, %185 : vector<8x128xf32>
    %c48 = arith.constant 48 : index
    %c0_56 = arith.constant 0 : index
    %187 = vector.load %arg9[%c48, %c0_56] : memref<64x512xf32, #tpu.memory_space<vmem>>, vector<8x512xf32>
    %c0_57 = arith.constant 0 : index
    %c0_58 = arith.constant 0 : index
    %188 = vector.load %arg5[%c0_57, %c0_58] : memref<128x512xf32, #tpu.memory_space<vmem>>, vector<128x512xf32>
    %cst_59 = arith.constant dense<0.000000e+00> : vector<8x512xf32>
    %189 = tpu.matmul %186, %188, %cst_59 {dimension_numbers = #tpu.dot_dimension_numbers<[1], [0], [0], [1], [0, 0, 1, 1], [], []>} : vector<8x128xf32>, vector<128x512xf32>, vector<8x512xf32> -> vector<8x512xf32>
    %190 = arith.addf %187, %189 : vector<8x512xf32>
    %191 = vector.extract_strided_slice %190 {offsets = [0, 0], sizes = [8, 128], strides = [1, 1]} : vector<8x512xf32> to vector<8x128xf32>
    %192 = arith.negf %191 : vector<8x128xf32>
    %193 = math.exp %192 : vector<8x128xf32>
    %cst_60 = arith.constant 1.000000e+00 : f32
    %194 = vector.broadcast %cst_60 : f32 to vector<8x128xf32>
    %195 = arith.addf %194, %193 : vector<8x128xf32>
    %196 = arith.divf %194, %195 : vector<8x128xf32>
    %197 = vector.extract_strided_slice %190 {offsets = [0, 128], sizes = [8, 128], strides = [1, 1]} : vector<8x512xf32> to vector<8x128xf32>
    %198 = arith.negf %197 : vector<8x128xf32>
    %199 = math.exp %198 : vector<8x128xf32>
    %cst_61 = arith.constant 1.000000e+00 : f32
    %200 = vector.broadcast %cst_61 : f32 to vector<8x128xf32>
    %201 = arith.addf %200, %199 : vector<8x128xf32>
    %202 = arith.divf %200, %201 : vector<8x128xf32>
    %203 = vector.extract_strided_slice %190 {offsets = [0, 256], sizes = [8, 128], strides = [1, 1]} : vector<8x512xf32> to vector<8x128xf32>
    %204 = math.tanh %203 : vector<8x128xf32>
    %205 = vector.extract_strided_slice %190 {offsets = [0, 384], sizes = [8, 128], strides = [1, 1]} : vector<8x512xf32> to vector<8x128xf32>
    %206 = arith.negf %205 : vector<8x128xf32>
    %207 = math.exp %206 : vector<8x128xf32>
    %cst_62 = arith.constant 1.000000e+00 : f32
    %208 = vector.broadcast %cst_62 : f32 to vector<8x128xf32>
    %209 = arith.addf %208, %207 : vector<8x128xf32>
    %210 = arith.divf %208, %209 : vector<8x128xf32>
    %211 = arith.mulf %202, %184 : vector<8x128xf32>
    %212 = arith.mulf %196, %204 : vector<8x128xf32>
    %213 = arith.addf %211, %212 : vector<8x128xf32>
    %214 = math.tanh %213 : vector<8x128xf32>
    %215 = arith.mulf %210, %214 : vector<8x128xf32>
    %c56 = arith.constant 56 : index
    %c0_63 = arith.constant 0 : index
    %216 = vector.load %arg9[%c56, %c0_63] : memref<64x512xf32, #tpu.memory_space<vmem>>, vector<8x512xf32>
    %c0_64 = arith.constant 0 : index
    %c0_65 = arith.constant 0 : index
    %217 = vector.load %arg5[%c0_64, %c0_65] : memref<128x512xf32, #tpu.memory_space<vmem>>, vector<128x512xf32>
    %cst_66 = arith.constant dense<0.000000e+00> : vector<8x512xf32>
    %218 = tpu.matmul %215, %217, %cst_66 {dimension_numbers = #tpu.dot_dimension_numbers<[1], [0], [0], [1], [0, 0, 1, 1], [], []>} : vector<8x128xf32>, vector<128x512xf32>, vector<8x512xf32> -> vector<8x512xf32>
    %219 = arith.addf %216, %218 : vector<8x512xf32>
    %220 = vector.extract_strided_slice %219 {offsets = [0, 0], sizes = [8, 128], strides = [1, 1]} : vector<8x512xf32> to vector<8x128xf32>
    %221 = arith.negf %220 : vector<8x128xf32>
    %222 = math.exp %221 : vector<8x128xf32>
    %cst_67 = arith.constant 1.000000e+00 : f32
    %223 = vector.broadcast %cst_67 : f32 to vector<8x128xf32>
    %224 = arith.addf %223, %222 : vector<8x128xf32>
    %225 = arith.divf %223, %224 : vector<8x128xf32>
    %226 = vector.extract_strided_slice %219 {offsets = [0, 128], sizes = [8, 128], strides = [1, 1]} : vector<8x512xf32> to vector<8x128xf32>
    %227 = arith.negf %226 : vector<8x128xf32>
    %228 = math.exp %227 : vector<8x128xf32>
    %cst_68 = arith.constant 1.000000e+00 : f32
    %229 = vector.broadcast %cst_68 : f32 to vector<8x128xf32>
    %230 = arith.addf %229, %228 : vector<8x128xf32>
    %231 = arith.divf %229, %230 : vector<8x128xf32>
    %232 = vector.extract_strided_slice %219 {offsets = [0, 256], sizes = [8, 128], strides = [1, 1]} : vector<8x512xf32> to vector<8x128xf32>
    %233 = math.tanh %232 : vector<8x128xf32>
    %234 = vector.extract_strided_slice %219 {offsets = [0, 384], sizes = [8, 128], strides = [1, 1]} : vector<8x512xf32> to vector<8x128xf32>
    %235 = arith.negf %234 : vector<8x128xf32>
    %236 = math.exp %235 : vector<8x128xf32>
    %cst_69 = arith.constant 1.000000e+00 : f32
    %237 = vector.broadcast %cst_69 : f32 to vector<8x128xf32>
    %238 = arith.addf %237, %236 : vector<8x128xf32>
    %239 = arith.divf %237, %238 : vector<8x128xf32>
    %240 = arith.mulf %231, %213 : vector<8x128xf32>
    %241 = arith.mulf %225, %233 : vector<8x128xf32>
    %242 = arith.addf %240, %241 : vector<8x128xf32>
    %243 = math.tanh %242 : vector<8x128xf32>
    %244 = arith.mulf %239, %243 : vector<8x128xf32>
    %c0_70 = arith.constant 0 : index
    %c0_71 = arith.constant 0 : index
    %245 = vector.load %arg10[%c0_70, %c0_71] : memref<8x128xf32, #tpu.memory_space<vmem>>, vector<8x128xf32>
    tpu.vector_store %arg10[%c0_70, %c0_71], %244 {strides = array<i32>} : memref<8x128xf32, #tpu.memory_space<vmem>>, vector<8x128xf32>,
    %c0_72 = arith.constant 0 : index
    %c0_73 = arith.constant 0 : index
    %246 = vector.load %arg11[%c0_72, %c0_73] : memref<8x128xf32, #tpu.memory_space<vmem>>, vector<8x128xf32>
    tpu.vector_store %arg11[%c0_72, %c0_73], %242 {strides = array<i32>} : memref<8x128xf32, #tpu.memory_space<vmem>>, vector<8x128xf32>,
    %c0_i32_74 = arith.constant 0 : i32
    %247 = arith.cmpi eq, %arg1, %c0_i32_74 : i32
    %248 = arith.extui %247 : i1 to i32
    %c0_i32_75 = arith.constant 0 : i32
    %249 = arith.cmpi ne, %248, %c0_i32_75 : i32
    scf.if %249 {
      %c0_76 = arith.constant 0 : index
      %c0_77 = arith.constant 0 : index
      %250 = vector.load %arg6[%c0_76, %c0_77] : memref<128x128xf32, #tpu.memory_space<vmem>>, vector<128x128xf32>
      %cst_78 = arith.constant dense<0.000000e+00> : vector<8x128xf32>
      %251 = tpu.matmul %244, %250, %cst_78 {dimension_numbers = #tpu.dot_dimension_numbers<[1], [0], [0], [1], [0, 0, 1, 1], [], []>} : vector<8x128xf32>, vector<128x128xf32>, vector<8x128xf32> -> vector<8x128xf32>
      %c0_79 = arith.constant 0 : index
      %c0_80 = arith.constant 0 : index
      %252 = vector.load %arg7[%c0_79, %c0_80] : memref<1x128xf32, #tpu.memory_space<vmem>>, vector<1x128xf32>
      %253 = vector.broadcast %252 : vector<1x128xf32> to vector<8x128xf32>
      %254 = arith.addf %251, %253 : vector<8x128xf32>
      %c0_81 = arith.constant 0 : index
      %c0_82 = arith.constant 0 : index
      %255 = vector.load %arg8[%c0_81, %c0_82] : memref<8x128xf32, #tpu.memory_space<vmem>>, vector<8x128xf32>
      tpu.vector_store %arg8[%c0_81, %c0_82], %254 {strides = array<i32>} : memref<8x128xf32, #tpu.memory_space<vmem>>, vector<8x128xf32>,
    } else {
    }
    return
  }
  func.func @transform_0(%arg0: i32, %arg1: i32) -> (i32, i32, i32) {
    %c0_i32 = arith.constant 0 : i32
    %c0_i32_0 = arith.constant 0 : i32
    return %arg0, %arg1, %c0_i32 : i32, i32, i32
  }
  func.func @transform_1(%arg0: i32, %arg1: i32) -> (i32, i32) {
    %c0_i32 = arith.constant 0 : i32
    %c0_i32_0 = arith.constant 0 : i32
    %c0_i32_1 = arith.constant 0 : i32
    return %c0_i32, %c0_i32_0 : i32, i32
  }
  func.func @transform_2(%arg0: i32, %arg1: i32) -> (i32, i32) {
    %c0_i32 = arith.constant 0 : i32
    %c0_i32_0 = arith.constant 0 : i32
    %c0_i32_1 = arith.constant 0 : i32
    return %c0_i32, %c0_i32_0 : i32, i32
  }
  func.func @transform_3(%arg0: i32, %arg1: i32) -> (i32, i32) {
    %c0_i32 = arith.constant 0 : i32
    %c0_i32_0 = arith.constant 0 : i32
    %c0_i32_1 = arith.constant 0 : i32
    return %c0_i32, %c0_i32_0 : i32, i32
  }
  func.func @transform_4(%arg0: i32, %arg1: i32) -> (i32, i32) {
    %c0_i32 = arith.constant 0 : i32
    %c0_i32_0 = arith.constant 0 : i32
    %c0_i32_1 = arith.constant 0 : i32
    return %c0_i32, %c0_i32_0 : i32, i32
  }
  func.func @transform_5(%arg0: i32, %arg1: i32) -> (i32, i32) {
    %c0_i32 = arith.constant 0 : i32
    %c0_i32_0 = arith.constant 0 : i32
    %c0_i32_1 = arith.constant 0 : i32
    return %c0_i32, %c0_i32_0 : i32, i32
  }
  func.func @transform_6(%arg0: i32, %arg1: i32) -> (i32, i32) {
    %c0_i32 = arith.constant 0 : i32
    %c0_i32_0 = arith.constant 0 : i32
    return %arg0, %c0_i32 : i32, i32
  }
}

</mosaic_0001>

<llo_original>
// kernel: tpu_custom_call.1
$region0: #{tpu_custom_call.1}
  #allocation0 [shape = 'u32[]', space=smem, size = 0x4, offset = 0x4, fixed_abs, tag = 'smem constant byte address 0x4 - core index']
  #allocation1 [shape = 'u32[144,128]{1,0:T(1,128)}', space=vmem, size = 0x12000, scoped, tag = 'internal scratch']
  #allocation2 [shape = 'f32[64,512]{1,0:T(8,128)}', space=vmem, size = 0x20000, scoped, tag = 'scratch operand']
  #allocation3 [shape = 'f32[8,128]{1,0:T(8,128)}', space=vmem, size = 0x1000, scoped, tag = 'scratch operand']
  #allocation4 [shape = 'f32[8,128]{1,0:T(8,128)}', space=vmem, size = 0x1000, scoped, tag = 'scratch operand']
  %s0 = inlined_call_operand.vmem [shape: f32[1,64,32], index: 0, kind: input, shape index: {}]
  %s1 = inlined_call_operand.hbm [shape: f32[32,512], index: 1, kind: input, shape index: {}]
  %s2 = inlined_call_operand.vmem [shape: f32[1,512], index: 2, kind: input, shape index: {}]
  %s3 = inlined_call_operand.hbm [shape: f32[128,512], index: 3, kind: input, shape index: {}]
  %s4 = inlined_call_operand.hbm [shape: f32[128,128], index: 4, kind: input, shape index: {}]
  %s5 = inlined_call_operand.vmem [shape: f32[1,128], index: 5, kind: input, shape index: {}]
  %s6 = inlined_call_operand.hbm [shape: f32[8,128], index: 6, kind: output, shape index: {}]
  %s7 = sld [smem:[#allocation0]]
  $region54: #{tpu_custom_call.1} parent=0
    _
  %s9 = ssub.s32 1, %s7
  %s10 = scalar_select 0, %s9, %s7
  $region1: #{tpu_custom_call.1} parent=0
    #allocation5 [shape = 'u8[65536]{0}', space=vmem, size = 0x10000, scoped, tag = 'input window, operand 1, single buffered']
    #allocation6 [shape = 's32[1]{0}', space=sflag, size = 0x4, scoped, tag = 'scoped memory for tpu_custom_call.1']
    #allocation7 [shape = 's32[1]{0}', space=sflag, size = 0x4, scoped, tag = 'scoped memory for tpu_custom_call.1']
    #allocation8 [shape = 'u8[262144]{0}', space=vmem, size = 0x40000, scoped, tag = 'input window, operand 3, single buffered']
    #allocation9 [shape = 's32[1]{0}', space=sflag, size = 0x4, scoped, tag = 'scoped memory for tpu_custom_call.1']
    #allocation10 [shape = 'u8[65536]{0}', space=vmem, size = 0x10000, scoped, tag = 'input window, operand 4, single buffered']
    #allocation11 [shape = 'u8[4096]{0}', space=vmem, size = 0x1000, scoped, tag = 'output window, operand 0, single buffered']
    %11 = vsyncpa [#allocation6], 0
    %12 = vsyncpa [#allocation9], 0
    %13 = vsyncpa [#allocation7], 0
    // Predicated region
    $region2: #{tpu_custom_call.1} parent=1 // pred_check
      _
    $region3: #{tpu_custom_call.1} parent=1 // pred_check_branch
      %15 = sbr.rel (0) target = $region5
    $region4: #{tpu_custom_call.1} parent=1 // pred_region
      _
    $region5: #{tpu_custom_call.1} parent=1 // pred_fallthru
      _
    // Predicated region
    $region6: #{tpu_custom_call.1} parent=1 // pred_check
      _
    $region7: #{tpu_custom_call.1} parent=1 // pred_check_branch
      %17 = sbr.rel (0) target = $region9
    $region8: #{tpu_custom_call.1} parent=1 // pred_region
      %s19 = ssub.s32 2048, 2048
      %20 = vsyncadd [#allocation6], %s19
      %s21 = sshll.u32 [#allocation5], 4
      %s22 = int_to_ptr.vmem [resolvable:$true] %s21
      %27 = dma.hbm_to_vmem [thread:$0]  %s1, 2048, %s22, [#allocation6], 512, 512, 32
    $region9: #{tpu_custom_call.1} parent=1 // pred_fallthru
      _
    // Predicated region
    $region10: #{tpu_custom_call.1} parent=1 // pred_check
      _
    $region11: #{tpu_custom_call.1} parent=1 // pred_check_branch
      %29 = sbr.rel (0) target = $region13
    $region12: #{tpu_custom_call.1} parent=1 // pred_region
      _
    $region13: #{tpu_custom_call.1} parent=1 // pred_fallthru
      _
    // Predicated region
    $region14: #{tpu_custom_call.1} parent=1 // pred_check
      _
    $region15: #{tpu_custom_call.1} parent=1 // pred_check_branch
      %31 = sbr.rel (0) target = $region17
    $region16: #{tpu_custom_call.1} parent=1 // pred_region
      %s33 = ssub.s32 8192, 8192
      %34 = vsyncadd [#allocation9], %s33
      %s35 = sshll.u32 [#allocation8], 4
      %s36 = int_to_ptr.vmem [resolvable:$true] %s35
      %41 = dma.hbm_to_vmem [thread:$0]  %s3, 8192, %s36, [#allocation9], 512, 512, 32
    $region17: #{tpu_custom_call.1} parent=1 // pred_fallthru
      _
    // Predicated region
    $region18: #{tpu_custom_call.1} parent=1 // pred_check
      _
    $region19: #{tpu_custom_call.1} parent=1 // pred_check_branch
      %43 = sbr.rel (0) target = $region21
    $region20: #{tpu_custom_call.1} parent=1 // pred_region
      %s45 = ssub.s32 2048, 2048
      %46 = vsyncadd [#allocation9], %s45
      %s47 = sshll.u32 [#allocation10], 4
      %s48 = int_to_ptr.vmem [resolvable:$true] %s47
      %53 = dma.hbm_to_vmem [thread:$0]  %s4, 2048, %s48, [#allocation9], 128, 128, 8
    $region21: #{tpu_custom_call.1} parent=1 // pred_fallthru
      _
    // Predicated region
    $region22: #{tpu_custom_call.1} parent=1 // pred_check
      _
    $region23: #{tpu_custom_call.1} parent=1 // pred_check_branch
      %55 = sbr.rel (0) target = $region25
    $region24: #{tpu_custom_call.1} parent=1 // pred_region
      _
    $region25: #{tpu_custom_call.1} parent=1 // pred_fallthru
      _
    // Predicated region
    $region26: #{tpu_custom_call.1} parent=1 // pred_check
      _
    $region27: #{tpu_custom_call.1} parent=1 // pred_check_branch
      %57 = sbr.rel (0) target = $region29
    $region28: #{tpu_custom_call.1} parent=1 // pred_region
      %58 = dma.done [#allocation6], 2048
    $region29: #{tpu_custom_call.1} parent=1 // pred_fallthru
      _
    // Predicated region
    $region30: #{tpu_custom_call.1} parent=1 // pred_check
      _
    $region31: #{tpu_custom_call.1} parent=1 // pred_check_branch
      %60 = sbr.rel (0) target = $region33
    $region32: #{tpu_custom_call.1} parent=1 // pred_region
      %61 = dma.done [#allocation9], 8192
    $region33: #{tpu_custom_call.1} parent=1 // pred_fallthru
      _
    // Predicated region
    $region34: #{tpu_custom_call.1} parent=1 // pred_check
      _
    $region35: #{tpu_custom_call.1} parent=1 // pred_check_branch
      %63 = sbr.rel (0) target = $region37
    $region36: #{tpu_custom_call.1} parent=1 // pred_region
      %64 = dma.done [#allocation9], 2048
    $region37: #{tpu_custom_call.1} parent=1 // pred_fallthru
      _
    %p65 = scmp.eq.s32.totalorder 0, 0
    // Predicated region
    $region38: #{tpu_custom_call.1} parent=1 // pred_check
      %p66 = pneg %p65
    $region39: #{tpu_custom_call.1} parent=1 // pred_check_branch
      %68 = sbr.rel (%p66) target = $region41
    $region40: #{tpu_custom_call.1} parent=1 // pred_region
      %69 = vst [vmem:[#allocation3] sm:$0xff] 0.0
      %70 = vst [vmem:[#allocation4] sm:$0xff] 0.0
    $region41: #{tpu_custom_call.1} parent=1 // pred_fallthru
      _
    %v71 = vld [vmem:[%s0] sm:$0xff]
    %v72 = vld [vmem:[%s0 + $0x8] sm:$0xff]
    %v73 = vld [vmem:[%s0 + $0x10] sm:$0xff]
    %v74 = vld [vmem:[%s0 + $0x18] sm:$0xff]
    %v75 = vld [vmem:[%s0 + $0x20] sm:$0xff]
    %v76 = vld [vmem:[%s0 + $0x28] sm:$0xff]
    %v77 = vld [vmem:[%s0 + $0x30] sm:$0xff]
    %v78 = vld [vmem:[%s0 + $0x38] sm:$0xff]
    %v79 = vld [vmem:[#allocation5] sm:$0xff]
    %v80 = vld [vmem:[#allocation5 + $0x8] sm:$0xff]
    %v81 = vld [vmem:[#allocation5 + $0x10] sm:$0xff]
    %v82 = vld [vmem:[#allocation5 + $0x18] sm:$0xff]
    %v83 = vld [vmem:[#allocation5 + $0x20] sm:$0xff]
    %v84 = vld [vmem:[#allocation5 + $0x28] sm:$0xff]
    %v85 = vld [vmem:[#allocation5 + $0x30] sm:$0xff]
    %v86 = vld [vmem:[#allocation5 + $0x38] sm:$0xff]
    %v87 = vld [vmem:[#allocation5 + $0x40] sm:$0xff]
    %v88 = vld [vmem:[#allocation5 + $0x48] sm:$0xff]
    %v89 = vld [vmem:[#allocation5 + $0x50] sm:$0xff]
    %v90 = vld [vmem:[#allocation5 + $0x58] sm:$0xff]
    %v91 = vld [vmem:[#allocation5 + $0x60] sm:$0xff]
    %v92 = vld [vmem:[#allocation5 + $0x68] sm:$0xff]
    %v93 = vld [vmem:[#allocation5 + $0x70] sm:$0xff]
    %v94 = vld [vmem:[#allocation5 + $0x78] sm:$0xff]
    %v95 = vld [vmem:[%s2] sm:$0xf]
    %v97 = vlaneseq
    %v98 = vshrl.u32 %v97, 7
    %v99 = vsub.s32 0, %v98
    %v100 = vrot.slane %v95, %v99
    %v101 = vlaneseq
    %v102 = vshrl.u32 %v101, 7
    %v103 = vsub.s32 1, %v102
    %v104 = vrot.slane %v95, %v103
    %v105 = vlaneseq
    %v106 = vshrl.u32 %v105, 7
    %v107 = vsub.s32 2, %v106
    %v108 = vrot.slane %v95, %v107
    %v109 = vlaneseq
    %v110 = vshrl.u32 %v109, 7
    %v111 = vsub.s32 3, %v110
    %v112 = vrot.slane %v95, %v111
    %vm117 = vcmask 261120
    %v119 = vsel %vm117, %v71, 0
    %v122 = vsel %vm117, %v72, 0
    %v125 = vsel %vm117, %v73, 0
    %v128 = vsel %vm117, %v74, 0
    %v131 = vsel %vm117, %v75, 0
    %v134 = vsel %vm117, %v76, 0
    %v137 = vsel %vm117, %v77, 0
    %v140 = vsel %vm117, %v78, 0
    %142 = vmatprep.subr.mxu0 %v80
    %143 = vmatpush1.msra.mxu0 %v79
    %144 = vmatprep.subr.mxu0 %v84
    %145 = vmatpush1.msra.mxu0 %v83
    %146 = vmatprep.subr.mxu0 %v88
    %147 = vmatpush1.msra.mxu0 %v87
    %148 = vmatprep.subr.mxu0 %v92
    %149 = vmatpush1.msra.mxu0 %v91
    %150 = vmatprep.subr.mxu0 0.0
    %151 = vmatpush1.msra.mxu0 0.0
    %152 = vmatprep.subr.mxu0 0.0
    %153 = vmatpush1.msra.mxu0 0.0
    %154 = vmatprep.subr.mxu0 0.0
    %155 = vmatpush1.msra.mxu0 0.0
    %156 = vmatprep.subr.mxu0 0.0
    %157 = vmatpush1.msra.mxu0 0.0
    %158 = vmatprep.subr.mxu0 0.0
    %159 = vmatpush1.msra.mxu0 0.0
    %160 = vmatprep.subr.mxu0 0.0
    %161 = vmatpush1.msra.mxu0 0.0
    %162 = vmatprep.subr.mxu0 0.0
    %163 = vmatpush1.msra.mxu0 0.0
    %164 = vmatprep.subr.mxu0 0.0
    %165 = vmatpush1.msra.mxu0 0.0
    %166 = vmatprep.subr.mxu0 0.0
    %167 = vmatpush1.msra.mxu0 0.0
    %168 = vmatprep.subr.mxu0 0.0
    %169 = vmatpush1.msra.mxu0 0.0
    %170 = vmatprep.subr.mxu0 0.0
    %171 = vmatpush1.msra.mxu0 0.0
    %172 = vmatprep.subr.mxu0 0.0
    %173 = vmatpush1.msra.mxu0 0.0
    %174 = vmatprep.subr.mxu0 0.0
    %175 = vmatpush1.msra.mxu0 0.0
    %176 = vmatprep.subr.mxu0 0.0
    %177 = vmatpush1.msra.mxu0 0.0
    %178 = vmatprep.subr.mxu0 0.0
    %179 = vmatpush1.msra.mxu0 0.0
    %180 = vmatprep.subr.mxu0 0.0
    %181 = vmatpush1.msra.mxu0 0.0
    %182 = vmatprep.subr.mxu0 0.0
    %183 = vmatpush1.msra.mxu0 0.0
    %184 = vmatprep.subr.mxu0 0.0
    %185 = vmatpush1.msra.mxu0 0.0
    %186 = vmatprep.subr.mxu0 0.0
    %187 = vmatpush1.msra.mxu0 0.0
    %188 = vmatprep.subr.mxu0 0.0
    %189 = vmatpush1.msra.mxu0 0.0
    %190 = vmatprep.subr.mxu0 0.0
    %191 = vmatpush1.msra.mxu0 0.0
    %192 = vmatprep.subr.mxu0 0.0
    %193 = vmatpush1.msra.mxu0 0.0
    %194 = vmatprep.subr.mxu0 0.0
    %195 = vmatpush1.msra.mxu0 0.0
    %196 = vmatprep.subr.mxu0 0.0
    %197 = vmatpush1.msra.mxu0 0.0
    %198 = vmatprep.subr.mxu0 0.0
    %199 = vmatpush1.msra.mxu0 0.0
    %200 = vmatprep.subr.mxu0 0.0
    %201 = vmatpush1.msra.mxu0 0.0
    %202 = vmatprep.subr.mxu0 0.0
    %203 = vmatpush1.msra.mxu0 0.0
    %204 = vmatprep.subr.mxu0 0.0
    %205 = vmatpush1.msra.mxu0 0.0
    %206 = vmatprep.mubr.f32.mxu0 0.0
    %207 = vmatmul.mubr.f32.gmra.mrb[0].mxu0 %v119
    %v208 = vpop.f32.mrb[0].mxu0
    %v209 = vadd.f32 %v100, %v208
    %v210 = vpop.f32.mrb[0].mxu0
    %v211 = vadd.f32 %v104, %v210
    %212 = vmatprep.mubr.f32.mxu0 0.0
    %213 = vmatmul.mubr.f32.gmra.mrb[0].mxu0 %v122
    %v214 = vpop.f32.mrb[0].mxu0
    %v215 = vadd.f32 %v100, %v214
    %v216 = vpop.f32.mrb[0].mxu0
    %v217 = vadd.f32 %v104, %v216
    %218 = vmatprep.mubr.f32.mxu0 0.0
    %219 = vmatmul.mubr.f32.gmra.mrb[0].mxu0 %v125
    %v220 = vpop.f32.mrb[0].mxu0
    %v221 = vadd.f32 %v100, %v220
    %v222 = vpop.f32.mrb[0].mxu0
    %v223 = vadd.f32 %v104, %v222
    %224 = vmatprep.mubr.f32.mxu0 0.0
    %225 = vmatmul.mubr.f32.gmra.mrb[0].mxu0 %v128
    %v226 = vpop.f32.mrb[0].mxu0
    %v227 = vadd.f32 %v100, %v226
    %v228 = vpop.f32.mrb[0].mxu0
    %v229 = vadd.f32 %v104, %v228
    %230 = vmatprep.mubr.f32.mxu0 0.0
    %231 = vmatmul.mubr.f32.gmra.mrb[0].mxu0 %v131
    %v232 = vpop.f32.mrb[0].mxu0
    %v233 = vadd.f32 %v100, %v232
    %v234 = vpop.f32.mrb[0].mxu0
    %v235 = vadd.f32 %v104, %v234
    %236 = vmatprep.mubr.f32.mxu0 0.0
    %237 = vmatmul.mubr.f32.gmra.mrb[0].mxu0 %v134
    %v238 = vpop.f32.mrb[0].mxu0
    %v239 = vadd.f32 %v100, %v238
    %v240 = vpop.f32.mrb[0].mxu0
    %v241 = vadd.f32 %v104, %v240
    %242 = vmatprep.mubr.f32.mxu0 0.0
    %243 = vmatmul.mubr.f32.gmra.mrb[0].mxu0 %v137
    %v244 = vpop.f32.mrb[0].mxu0
    %v245 = vadd.f32 %v100, %v244
    %v246 = vpop.f32.mrb[0].mxu0
    %v247 = vadd.f32 %v104, %v246
    %248 = vmatprep.mubr.f32.mxu0 0.0
    %249 = vmatmul.mubr.f32.gmra.mrb[0].mxu0 %v140
    %v250 = vpop.f32.mrb[0].mxu0
    %v251 = vadd.f32 %v100, %v250
    %v252 = vpop.f32.mrb[0].mxu0
    %v253 = vadd.f32 %v104, %v252
    %254 = vdwg.mxu0
    %255 = vmatprep.subr.mxu0 %v82
    %256 = vmatpush1.msra.mxu0 %v81
    %257 = vmatprep.subr.mxu0 %v86
    %258 = vmatpush1.msra.mxu0 %v85
    %259 = vmatprep.subr.mxu0 %v90
    %260 = vmatpush1.msra.mxu0 %v89
    %261 = vmatprep.subr.mxu0 %v94
    %262 = vmatpush1.msra.mxu0 %v93
    %263 = vmatprep.subr.mxu0 0.0
    %264 = vmatpush1.msra.mxu0 0.0
    %265 = vmatprep.subr.mxu0 0.0
    %266 = vmatpush1.msra.mxu0 0.0
    %267 = vmatprep.subr.mxu0 0.0
    %268 = vmatpush1.msra.mxu0 0.0
    %269 = vmatprep.subr.mxu0 0.0
    %270 = vmatpush1.msra.mxu0 0.0
    %271 = vmatprep.subr.mxu0 0.0
    %272 = vmatpush1.msra.mxu0 0.0
    %273 = vmatprep.subr.mxu0 0.0
    %274 = vmatpush1.msra.mxu0 0.0
    %275 = vmatprep.subr.mxu0 0.0
    %276 = vmatpush1.msra.mxu0 0.0
    %277 = vmatprep.subr.mxu0 0.0
    %278 = vmatpush1.msra.mxu0 0.0
    %279 = vmatprep.subr.mxu0 0.0
    %280 = vmatpush1.msra.mxu0 0.0
    %281 = vmatprep.subr.mxu0 0.0
    %282 = vmatpush1.msra.mxu0 0.0
    %283 = vmatprep.subr.mxu0 0.0
    %284 = vmatpush1.msra.mxu0 0.0
    %285 = vmatprep.subr.mxu0 0.0
    %286 = vmatpush1.msra.mxu0 0.0
    %287 = vmatprep.subr.mxu0 0.0
    %288 = vmatpush1.msra.mxu0 0.0
    %289 = vmatprep.subr.mxu0 0.0
    %290 = vmatpush1.msra.mxu0 0.0
    %291 = vmatprep.subr.mxu0 0.0
    %292 = vmatpush1.msra.mxu0 0.0
    %293 = vmatprep.subr.mxu0 0.0
    %294 = vmatpush1.msra.mxu0 0.0
    %295 = vmatprep.subr.mxu0 0.0
    %296 = vmatpush1.msra.mxu0 0.0
    %297 = vmatprep.subr.mxu0 0.0
    %298 = vmatpush1.msra.mxu0 0.0
    %299 = vmatprep.subr.mxu0 0.0
    %300 = vmatpush1.msra.mxu0 0.0
    %301 = vmatprep.subr.mxu0 0.0
    %302 = vmatpush1.msra.mxu0 0.0
    %303 = vmatprep.subr.mxu0 0.0
    %304 = vmatpush1.msra.mxu0 0.0
    %305 = vmatprep.subr.mxu0 0.0
    %306 = vmatpush1.msra.mxu0 0.0
    %307 = vmatprep.subr.mxu0 0.0
    %308 = vmatpush1.msra.mxu0 0.0
    %309 = vmatprep.subr.mxu0 0.0
    %310 = vmatpush1.msra.mxu0 0.0
    %311 = vmatprep.subr.mxu0 0.0
    %312 = vmatpush1.msra.mxu0 0.0
    %313 = vmatprep.subr.mxu0 0.0
    %314 = vmatpush1.msra.mxu0 0.0
    %315 = vmatprep.subr.mxu0 0.0
    %316 = vmatpush1.msra.mxu0 0.0
    %317 = vmatprep.subr.mxu0 0.0
    %318 = vmatpush1.msra.mxu0 0.0
    %319 = vmatprep.mubr.f32.mxu0 0.0
    %320 = vmatmul.mubr.f32.gmra.mrb[0].mxu0 %v119
    %v321 = vpop.f32.mrb[0].mxu0
    %v322 = vadd.f32 %v108, %v321
    %v323 = vpop.f32.mrb[0].mxu0
    %v324 = vadd.f32 %v112, %v323
    %325 = vmatprep.mubr.f32.mxu0 0.0
    %326 = vmatmul.mubr.f32.gmra.mrb[0].mxu0 %v122
    %v327 = vpop.f32.mrb[0].mxu0
    %v328 = vadd.f32 %v108, %v327
    %v329 = vpop.f32.mrb[0].mxu0
    %v330 = vadd.f32 %v112, %v329
    %331 = vmatprep.mubr.f32.mxu0 0.0
    %332 = vmatmul.mubr.f32.gmra.mrb[0].mxu0 %v125
    %v333 = vpop.f32.mrb[0].mxu0
    %v334 = vadd.f32 %v108, %v333
    %v335 = vpop.f32.mrb[0].mxu0
    %v336 = vadd.f32 %v112, %v335
    %337 = vmatprep.mubr.f32.mxu0 0.0
    %338 = vmatmul.mubr.f32.gmra.mrb[0].mxu0 %v128
    %v339 = vpop.f32.mrb[0].mxu0
    %v340 = vadd.f32 %v108, %v339
    %v341 = vpop.f32.mrb[0].mxu0
    %v342 = vadd.f32 %v112, %v341
    %343 = vmatprep.mubr.f32.mxu0 0.0
    %344 = vmatmul.mubr.f32.gmra.mrb[0].mxu0 %v131
    %v345 = vpop.f32.mrb[0].mxu0
    %v346 = vadd.f32 %v108, %v345
    %v347 = vpop.f32.mrb[0].mxu0
    %v348 = vadd.f32 %v112, %v347
    %349 = vmatprep.mubr.f32.mxu0 0.0
    %350 = vmatmul.mubr.f32.gmra.mrb[0].mxu0 %v134
    %v351 = vpop.f32.mrb[0].mxu0
    %v352 = vadd.f32 %v108, %v351
    %v353 = vpop.f32.mrb[0].mxu0
    %v354 = vadd.f32 %v112, %v353
    %355 = vmatprep.mubr.f32.mxu0 0.0
    %356 = vmatmul.mubr.f32.gmra.mrb[0].mxu0 %v137
    %v357 = vpop.f32.mrb[0].mxu0
    %v358 = vadd.f32 %v108, %v357
    %v359 = vpop.f32.mrb[0].mxu0
    %v360 = vadd.f32 %v112, %v359
    %361 = vmatprep.mubr.f32.mxu0 0.0
    %362 = vmatmul.mubr.f32.gmra.mrb[0].mxu0 %v140
    %v363 = vpop.f32.mrb[0].mxu0
    %v364 = vadd.f32 %v108, %v363
    %v365 = vpop.f32.mrb[0].mxu0
    %v366 = vadd.f32 %v112, %v365
    %367 = vdwg.mxu0
    %368 = vst [vmem:[#allocation2] sm:$0xff] %v209
    %369 = vst [vmem:[#allocation2 + $0x8] sm:$0xff] %v211
    %370 = vst [vmem:[#allocation2 + $0x10] sm:$0xff] %v322
    %371 = vst [vmem:[#allocation2 + $0x18] sm:$0xff] %v324
    %372 = vst [vmem:[#allocation2 + $0x20] sm:$0xff] %v215
    %373 = vst [vmem:[#allocation2 + $0x28] sm:$0xff] %v217
    %374 = vst [vmem:[#allocation2 + $0x30] sm:$0xff] %v328
    %375 = vst [vmem:[#allocation2 + $0x38] sm:$0xff] %v330
    %376 = vst [vmem:[#allocation2 + $0x40] sm:$0xff] %v221
    %377 = vst [vmem:[#allocation2 + $0x48] sm:$0xff] %v223
    %378 = vst [vmem:[#allocation2 + $0x50] sm:$0xff] %v334
    %379 = vst [vmem:[#allocation2 + $0x58] sm:$0xff] %v336
    %380 = vst [vmem:[#allocation2 + $0x60] sm:$0xff] %v227
    %381 = vst [vmem:[#allocation2 + $0x68] sm:$0xff] %v229
    %382 = vst [vmem:[#allocation2 + $0x70] sm:$0xff] %v340
    %383 = vst [vmem:[#allocation2 + $0x78] sm:$0xff] %v342
    %384 = vst [vmem:[#allocation2 + $0x80] sm:$0xff] %v233
    %385 = vst [vmem:[#allocation2 + $0x88] sm:$0xff] %v235
    %386 = vst [vmem:[#allocation2 + $0x90] sm:$0xff] %v346
    %387 = vst [vmem:[#allocation2 + $0x98] sm:$0xff] %v348
    %388 = vst [vmem:[#allocation2 + $0xa0] sm:$0xff] %v239
    %389 = vst [vmem:[#allocation2 + $0xa8] sm:$0xff] %v241
    %390 = vst [vmem:[#allocation2 + $0xb0] sm:$0xff] %v352
    %391 = vst [vmem:[#allocation2 + $0xb8] sm:$0xff] %v354
    %392 = vst [vmem:[#allocation2 + $0xc0] sm:$0xff] %v245
    %393 = vst [vmem:[#allocation2 + $0xc8] sm:$0xff] %v247
    %394 = vst [vmem:[#allocation2 + $0xd0] sm:$0xff] %v358
    %395 = vst [vmem:[#allocation2 + $0xd8] sm:$0xff] %v360
    %396 = vst [vmem:[#allocation2 + $0xe0] sm:$0xff] %v251
    %397 = vst [vmem:[#allocation2 + $0xe8] sm:$0xff] %v253
    %398 = vst [vmem:[#allocation2 + $0xf0] sm:$0xff] %v364
    %399 = vst [vmem:[#allocation2 + $0xf8] sm:$0xff] %v366
    %v400 = vld [vmem:[#allocation3] sm:$0xff]
    %v401 = vld [vmem:[#allocation4] sm:$0xff]
    %v402 = vld [vmem:[#allocation2] sm:$0xff]
    %v403 = vld [vmem:[#allocation2 + $0x8] sm:$0xff]
    %v404 = vld [vmem:[#allocation2 + $0x10] sm:$0xff]
    %v405 = vld [vmem:[#allocation2 + $0x18] sm:$0xff]
    %v406 = vld [vmem:[#allocation8] sm:$0xff]
    %v407 = vld [vmem:[#allocation8 + $0x8] sm:$0xff]
    %v408 = vld [vmem:[#allocation8 + $0x10] sm:$0xff]
    %v409 = vld [vmem:[#allocation8 + $0x18] sm:$0xff]
    %v410 = vld [vmem:[#allocation8 + $0x20] sm:$0xff]
    %v411 = vld [vmem:[#allocation8 + $0x28] sm:$0xff]
    %v412 = vld [vmem:[#allocation8 + $0x30] sm:$0xff]
    %v413 = vld [vmem:[#allocation8 + $0x38] sm:$0xff]
    %v414 = vld [vmem:[#allocation8 + $0x40] sm:$0xff]
    %v415 = vld [vmem:[#allocation8 + $0x48] sm:$0xff]
    %v416 = vld [vmem:[#allocation8 + $0x50] sm:$0xff]
    %v417 = vld [vmem:[#allocation8 + $0x58] sm:$0xff]
    %v418 = vld [vmem:[#allocation8 + $0x60] sm:$0xff]
    %v419 = vld [vmem:[#allocation8 + $0x68] sm:$0xff]
    %v420 = vld [vmem:[#allocation8 + $0x70] sm:$0xff]
    %v421 = vld [vmem:[#allocation8 + $0x78] sm:$0xff]
    %v422 = vld [vmem:[#allocation8 + $0x80] sm:$0xff]
    %v423 = vld [vmem:[#allocation8 + $0x88] sm:$0xff]
    %v424 = vld [vmem:[#allocation8 + $0x90] sm:$0xff]
    %v425 = vld [vmem:[#allocation8 + $0x98] sm:$0xff]
    %v426 = vld [vmem:[#allocation8 + $0xa0] sm:$0xff]
    %v427 = vld [vmem:[#allocation8 + $0xa8] sm:$0xff]
    %v428 = vld [vmem:[#allocation8 + $0xb0] sm:$0xff]
    %v429 = vld [vmem:[#allocation8 + $0xb8] sm:$0xff]
    %v430 = vld [vmem:[#allocation8 + $0xc0] sm:$0xff]
    %v431 = vld [vmem:[#allocation8 + $0xc8] sm:$0xff]
    %v432 = vld [vmem:[#allocation8 + $0xd0] sm:$0xff]
    %v433 = vld [vmem:[#allocation8 + $0xd8] sm:$0xff]
    %v434 = vld [vmem:[#allocation8 + $0xe0] sm:$0xff]
    %v435 = vld [vmem:[#allocation8 + $0xe8] sm:$0xff]
    %v436 = vld [vmem:[#allocation8 + $0xf0] sm:$0xff]
    %v437 = vld [vmem:[#allocation8 + $0xf8] sm:$0xff]
    %v438 = vld [vmem:[#allocation8 + $0x100] sm:$0xff]
    %v439 = vld [vmem:[#allocation8 + $0x108] sm:$0xff]
    %v440 = vld [vmem:[#allocation8 + $0x110] sm:$0xff]
    %v441 = vld [vmem:[#allocation8 + $0x118] sm:$0xff]
    %v442 = vld [vmem:[#allocation8 + $0x120] sm:$0xff]
    %v443 = vld [vmem:[#allocation8 + $0x128] sm:$0xff]
    %v444 = vld [vmem:[#allocation8 + $0x130] sm:$0xff]
    %v445 = vld [vmem:[#allocation8 + $0x138] sm:$0xff]
    %v446 = vld [vmem:[#allocation8 + $0x140] sm:$0xff]
    %v447 = vld [vmem:[#allocation8 + $0x148] sm:$0xff]
    %v448 = vld [vmem:[#allocation8 + $0x150] sm:$0xff]
    %v449 = vld [vmem:[#allocation8 + $0x158] sm:$0xff]
    %v450 = vld [vmem:[#allocation8 + $0x160] sm:$0xff]
    %v451 = vld [vmem:[#allocation8 + $0x168] sm:$0xff]
    %v452 = vld [vmem:[#allocation8 + $0x170] sm:$0xff]
    %v453 = vld [vmem:[#allocation8 + $0x178] sm:$0xff]
    %v454 = vld [vmem:[#allocation8 + $0x180] sm:$0xff]
    %v455 = vld [vmem:[#allocation8 + $0x188] sm:$0xff]
    %v456 = vld [vmem:[#allocation8 + $0x190] sm:$0xff]
    %v457 = vld [vmem:[#allocation8 + $0x198] sm:$0xff]
    %v458 = vld [vmem:[#allocation8 + $0x1a0] sm:$0xff]
    %v459 = vld [vmem:[#allocation8 + $0x1a8] sm:$0xff]
    %v460 = vld [vmem:[#allocation8 + $0x1b0] sm:$0xff]
    %v461 = vld [vmem:[#allocation8 + $0x1b8] sm:$0xff]
    %v462 = vld [vmem:[#allocation8 + $0x1c0] sm:$0xff]
    %v463 = vld [vmem:[#allocation8 + $0x1c8] sm:$0xff]
    %v464 = vld [vmem:[#allocation8 + $0x1d0] sm:$0xff]
    %v465 = vld [vmem:[#allocation8 + $0x1d8] sm:$0xff]
    %v466 = vld [vmem:[#allocation8 + $0x1e0] sm:$0xff]
    %v467 = vld [vmem:[#allocation8 + $0x1e8] sm:$0xff]
    %v468 = vld [vmem:[#allocation8 + $0x1f0] sm:$0xff]
    %v469 = vld [vmem:[#allocation8 + $0x1f8] sm:$0xff]
    %470 = vmatprep.subr.mxu0 %v407
    %471 = vmatpush1.msra.mxu0 %v406
    %472 = vmatprep.subr.mxu0 %v411
    %473 = vmatpush1.msra.mxu0 %v410
    %474 = vmatprep.subr.mxu0 %v415
    %475 = vmatpush1.msra.mxu0 %v414
    %476 = vmatprep.subr.mxu0 %v419
    %477 = vmatpush1.msra.mxu0 %v418
    %478 = vmatprep.subr.mxu0 %v423
    %479 = vmatpush1.msra.mxu0 %v422
    %480 = vmatprep.subr.mxu0 %v427
    %481 = vmatpush1.msra.mxu0 %v426
    %482 = vmatprep.subr.mxu0 %v431
    %483 = vmatpush1.msra.mxu0 %v430
    %484 = vmatprep.subr.mxu0 %v435
    %485 = vmatpush1.msra.mxu0 %v434
    %486 = vmatprep.subr.mxu0 %v439
    %487 = vmatpush1.msra.mxu0 %v438
    %488 = vmatprep.subr.mxu0 %v443
    %489 = vmatpush1.msra.mxu0 %v442
    %490 = vmatprep.subr.mxu0 %v447
    %491 = vmatpush1.msra.mxu0 %v446
    %492 = vmatprep.subr.mxu0 %v451
    %493 = vmatpush1.msra.mxu0 %v450
    %494 = vmatprep.subr.mxu0 %v455
    %495 = vmatpush1.msra.mxu0 %v454
    %496 = vmatprep.subr.mxu0 %v459
    %497 = vmatpush1.msra.mxu0 %v458
    %498 = vmatprep.subr.mxu0 %v463
    %499 = vmatpush1.msra.mxu0 %v462
    %500 = vmatprep.subr.mxu0 %v467
    %501 = vmatpush1.msra.mxu0 %v466
    %502 = vmatprep.subr.mxu0 0.0
    %503 = vmatpush1.msra.mxu0 0.0
    %504 = vmatprep.subr.mxu0 0.0
    %505 = vmatpush1.msra.mxu0 0.0
    %506 = vmatprep.subr.mxu0 0.0
    %507 = vmatpush1.msra.mxu0 0.0
    %508 = vmatprep.subr.mxu0 0.0
    %509 = vmatpush1.msra.mxu0 0.0
    %510 = vmatprep.subr.mxu0 0.0
    %511 = vmatpush1.msra.mxu0 0.0
    %512 = vmatprep.subr.mxu0 0.0
    %513 = vmatpush1.msra.mxu0 0.0
    %514 = vmatprep.subr.mxu0 0.0
    %515 = vmatpush1.msra.mxu0 0.0
    %516 = vmatprep.subr.mxu0 0.0
    %517 = vmatpush1.msra.mxu0 0.0
    %518 = vmatprep.subr.mxu0 0.0
    %519 = vmatpush1.msra.mxu0 0.0
    %520 = vmatprep.subr.mxu0 0.0
    %521 = vmatpush1.msra.mxu0 0.0
    %522 = vmatprep.subr.mxu0 0.0
    %523 = vmatpush1.msra.mxu0 0.0
    %524 = vmatprep.subr.mxu0 0.0
    %525 = vmatpush1.msra.mxu0 0.0
    %526 = vmatprep.subr.mxu0 0.0
    %527 = vmatpush1.msra.mxu0 0.0
    %528 = vmatprep.subr.mxu0 0.0
    %529 = vmatpush1.msra.mxu0 0.0
    %530 = vmatprep.subr.mxu0 0.0
    %531 = vmatpush1.msra.mxu0 0.0
    %532 = vmatprep.subr.mxu0 0.0
    %533 = vmatpush1.msra.mxu0 0.0
    %534 = vmatprep.mubr.f32.mxu0 0.0
    %535 = vmatmul.mubr.f32.gmra.mrb[0].mxu0 %v400
    %v536 = vpop.f32.mrb[0].mxu0
    %v537 = vadd.f32 0.0, %v536
    %v538 = vpop.f32.mrb[0].mxu0
    %v539 = vadd.f32 0.0, %v538
    %540 = vdwg.mxu0
    %541 = vmatprep.subr.mxu0 %v409
    %542 = vmatpush1.msra.mxu0 %v408
    %543 = vmatprep.subr.mxu0 %v413
    %544 = vmatpush1.msra.mxu0 %v412
    %545 = vmatprep.subr.mxu0 %v417
    %546 = vmatpush1.msra.mxu0 %v416
    %547 = vmatprep.subr.mxu0 %v421
    %548 = vmatpush1.msra.mxu0 %v420
    %549 = vmatprep.subr.mxu0 %v425
    %550 = vmatpush1.msra.mxu0 %v424
    %551 = vmatprep.subr.mxu0 %v429
    %552 = vmatpush1.msra.mxu0 %v428
    %553 = vmatprep.subr.mxu0 %v433
    %554 = vmatpush1.msra.mxu0 %v432
    %555 = vmatprep.subr.mxu0 %v437
    %556 = vmatpush1.msra.mxu0 %v436
    %557 = vmatprep.subr.mxu0 %v441
    %558 = vmatpush1.msra.mxu0 %v440
    %559 = vmatprep.subr.mxu0 %v445
    %560 = vmatpush1.msra.mxu0 %v444
    %561 = vmatprep.subr.mxu0 %v449
    %562 = vmatpush1.msra.mxu0 %v448
    %563 = vmatprep.subr.mxu0 %v453
    %564 = vmatpush1.msra.mxu0 %v452
    %565 = vmatprep.subr.mxu0 %v457
    %566 = vmatpush1.msra.mxu0 %v456
    %567 = vmatprep.subr.mxu0 %v461
    %568 = vmatpush1.msra.mxu0 %v460
    %569 = vmatprep.subr.mxu0 %v465
    %570 = vmatpush1.msra.mxu0 %v464
    %571 = vmatprep.subr.mxu0 %v469
    %572 = vmatpush1.msra.mxu0 %v468
    %573 = vmatprep.subr.mxu0 0.0
    %574 = vmatpush1.msra.mxu0 0.0
    %575 = vmatprep.subr.mxu0 0.0
    %576 = vmatpush1.msra.mxu0 0.0
    %577 = vmatprep.subr.mxu0 0.0
    %578 = vmatpush1.msra.mxu0 0.0
    %579 = vmatprep.subr.mxu0 0.0
    %580 = vmatpush1.msra.mxu0 0.0
    %581 = vmatprep.subr.mxu0 0.0
    %582 = vmatpush1.msra.mxu0 0.0
    %583 = vmatprep.subr.mxu0 0.0
    %584 = vmatpush1.msra.mxu0 0.0
    %585 = vmatprep.subr.mxu0 0.0
    %586 = vmatpush1.msra.mxu0 0.0
    %587 = vmatprep.subr.mxu0 0.0
    %588 = vmatpush1.msra.mxu0 0.0
    %589 = vmatprep.subr.mxu0 0.0
    %590 = vmatpush1.msra.mxu0 0.0
    %591 = vmatprep.subr.mxu0 0.0
    %592 = vmatpush1.msra.mxu0 0.0
    %593 = vmatprep.subr.mxu0 0.0
    %594 = vmatpush1.msra.mxu0 0.0
    %595 = vmatprep.subr.mxu0 0.0
    %596 = vmatpush1.msra.mxu0 0.0
    %597 = vmatprep.subr.mxu0 0.0
    %598 = vmatpush1.msra.mxu0 0.0
    %599 = vmatprep.subr.mxu0 0.0
    %600 = vmatpush1.msra.mxu0 0.0
    %601 = vmatprep.subr.mxu0 0.0
    %602 = vmatpush1.msra.mxu0 0.0
    %603 = vmatprep.subr.mxu0 0.0
    %604 = vmatpush1.msra.mxu0 0.0
    %605 = vmatprep.mubr.f32.mxu0 0.0
    %606 = vmatmul.mubr.f32.gmra.mrb[0].mxu0 %v400
    %v607 = vpop.f32.mrb[0].mxu0
    %v608 = vadd.f32 0.0, %v607
    %v609 = vpop.f32.mrb[0].mxu0
    %v610 = vadd.f32 0.0, %v609
    %611 = vdwg.mxu0
    %v612 = vadd.f32 %v402, %v537
    %v613 = vadd.f32 %v403, %v539
    %v614 = vadd.f32 %v404, %v608
    %v615 = vadd.f32 %v405, %v610
    %v616 = vxor.u32 %v612, 2147483648
    %v617 = vmul.f32 %v616, 1.442695
    %v618 = vpow.pop %v617
    %v619 = vadd.f32 %v618, 1.0
    %v620 = vrcp.pop %v619
    %v621 = vmul.f32 1.0, %v620
    %v622 = vxor.u32 %v613, 2147483648
    %v623 = vmul.f32 %v622, 1.442695
    %v624 = vpow.pop %v623
    %v625 = vadd.f32 %v624, 1.0
    %v626 = vrcp.pop %v625
    %v627 = vmul.f32 1.0, %v626
    %v628 = vtanh.pop %v614
    %v629 = vxor.u32 %v615, 2147483648
    %v630 = vmul.f32 %v629, 1.442695
    %v631 = vpow.pop %v630
    %v632 = vadd.f32 %v631, 1.0
    %v633 = vrcp.pop %v632
    %v634 = vmul.f32 1.0, %v633
    %v635 = vmul.f32 %v627, %v401
    %v636 = vmul.f32 %v621, %v628
    %v637 = vadd.f32 %v635, %v636
    %v638 = vtanh.pop %v637
    %v639 = vmul.f32 %v634, %v638
    %v640 = vld [vmem:[#allocation2 + $0x20] sm:$0xff]
    %v641 = vld [vmem:[#allocation2 + $0x28] sm:$0xff]
    %v642 = vld [vmem:[#allocation2 + $0x30] sm:$0xff]
    %v643 = vld [vmem:[#allocation2 + $0x38] sm:$0xff]
    %644 = vmatprep.subr.mxu0 %v407
    %645 = vmatpush1.msra.mxu0 %v406
    %646 = vmatprep.subr.mxu0 %v411
    %647 = vmatpush1.msra.mxu0 %v410
    %648 = vmatprep.subr.mxu0 %v415
    %649 = vmatpush1.msra.mxu0 %v414
    %650 = vmatprep.subr.mxu0 %v419
    %651 = vmatpush1.msra.mxu0 %v418
    %652 = vmatprep.subr.mxu0 %v423
    %653 = vmatpush1.msra.mxu0 %v422
    %654 = vmatprep.subr.mxu0 %v427
    %655 = vmatpush1.msra.mxu0 %v426
    %656 = vmatprep.subr.mxu0 %v431
    %657 = vmatpush1.msra.mxu0 %v430
    %658 = vmatprep.subr.mxu0 %v435
    %659 = vmatpush1.msra.mxu0 %v434
    %660 = vmatprep.subr.mxu0 %v439
    %661 = vmatpush1.msra.mxu0 %v438
    %662 = vmatprep.subr.mxu0 %v443
    %663 = vmatpush1.msra.mxu0 %v442
    %664 = vmatprep.subr.mxu0 %v447
    %665 = vmatpush1.msra.mxu0 %v446
    %666 = vmatprep.subr.mxu0 %v451
    %667 = vmatpush1.msra.mxu0 %v450
    %668 = vmatprep.subr.mxu0 %v455
    %669 = vmatpush1.msra.mxu0 %v454
    %670 = vmatprep.subr.mxu0 %v459
    %671 = vmatpush1.msra.mxu0 %v458
    %672 = vmatprep.subr.mxu0 %v463
    %673 = vmatpush1.msra.mxu0 %v462
    %674 = vmatprep.subr.mxu0 %v467
    %675 = vmatpush1.msra.mxu0 %v466
    %676 = vmatprep.subr.mxu0 0.0
    %677 = vmatpush1.msra.mxu0 0.0
    %678 = vmatprep.subr.mxu0 0.0
    %679 = vmatpush1.msra.mxu0 0.0
    %680 = vmatprep.subr.mxu0 0.0
    %681 = vmatpush1.msra.mxu0 0.0
    %682 = vmatprep.subr.mxu0 0.0
    %683 = vmatpush1.msra.mxu0 0.0
    %684 = vmatprep.subr.mxu0 0.0
    %685 = vmatpush1.msra.mxu0 0.0
    %686 = vmatprep.subr.mxu0 0.0
    %687 = vmatpush1.msra.mxu0 0.0
    %688 = vmatprep.subr.mxu0 0.0
    %689 = vmatpush1.msra.mxu0 0.0
    %690 = vmatprep.subr.mxu0 0.0
    %691 = vmatpush1.msra.mxu0 0.0
    %692 = vmatprep.subr.mxu0 0.0
    %693 = vmatpush1.msra.mxu0 0.0
    %694 = vmatprep.subr.mxu0 0.0
    %695 = vmatpush1.msra.mxu0 0.0
    %696 = vmatprep.subr.mxu0 0.0
    %697 = vmatpush1.msra.mxu0 0.0
    %698 = vmatprep.subr.mxu0 0.0
    %699 = vmatpush1.msra.mxu0 0.0
    %700 = vmatprep.subr.mxu0 0.0
    %701 = vmatpush1.msra.mxu0 0.0
    %702 = vmatprep.subr.mxu0 0.0
    %703 = vmatpush1.msra.mxu0 0.0
    %704 = vmatprep.subr.mxu0 0.0
    %705 = vmatpush1.msra.mxu0 0.0
    %706 = vmatprep.subr.mxu0 0.0
    %707 = vmatpush1.msra.mxu0 0.0
    %708 = vmatprep.mubr.f32.mxu0 0.0
    %709 = vmatmul.mubr.f32.gmra.mrb[0].mxu0 %v639
    %v710 = vpop.f32.mrb[0].mxu0
    %v711 = vadd.f32 0.0, %v710
    %v712 = vpop.f32.mrb[0].mxu0
    %v713 = vadd.f32 0.0, %v712
    %714 = vdwg.mxu0
    %715 = vmatprep.subr.mxu0 %v409
    %716 = vmatpush1.msra.mxu0 %v408
    %717 = vmatprep.subr.mxu0 %v413
    %718 = vmatpush1.msra.mxu0 %v412
    %719 = vmatprep.subr.mxu0 %v417
    %720 = vmatpush1.msra.mxu0 %v416
    %721 = vmatprep.subr.mxu0 %v421
    %722 = vmatpush1.msra.mxu0 %v420
    %723 = vmatprep.subr.mxu0 %v425
    %724 = vmatpush1.msra.mxu0 %v424
    %725 = vmatprep.subr.mxu0 %v429
    %726 = vmatpush1.msra.mxu0 %v428
    %727 = vmatprep.subr.mxu0 %v433
    %728 = vmatpush1.msra.mxu0 %v432
    %729 = vmatprep.subr.mxu0 %v437
    %730 = vmatpush1.msra.mxu0 %v436
    %731 = vmatprep.subr.mxu0 %v441
    %732 = vmatpush1.msra.mxu0 %v440
    %733 = vmatprep.subr.mxu0 %v445
    %734 = vmatpush1.msra.mxu0 %v444
    %735 = vmatprep.subr.mxu0 %v449
    %736 = vmatpush1.msra.mxu0 %v448
    %737 = vmatprep.subr.mxu0 %v453
    %738 = vmatpush1.msra.mxu0 %v452
    %739 = vmatprep.subr.mxu0 %v457
    %740 = vmatpush1.msra.mxu0 %v456
    %741 = vmatprep.subr.mxu0 %v461
    %742 = vmatpush1.msra.mxu0 %v460
    %743 = vmatprep.subr.mxu0 %v465
    %744 = vmatpush1.msra.mxu0 %v464
    %745 = vmatprep.subr.mxu0 %v469
    %746 = vmatpush1.msra.mxu0 %v468
    %747 = vmatprep.subr.mxu0 0.0
    %748 = vmatpush1.msra.mxu0 0.0
    %749 = vmatprep.subr.mxu0 0.0
    %750 = vmatpush1.msra.mxu0 0.0
    %751 = vmatprep.subr.mxu0 0.0
    %752 = vmatpush1.msra.mxu0 0.0
    %753 = vmatprep.subr.mxu0 0.0
    %754 = vmatpush1.msra.mxu0 0.0
    %755 = vmatprep.subr.mxu0 0.0
    %756 = vmatpush1.msra.mxu0 0.0
    %757 = vmatprep.subr.mxu0 0.0
    %758 = vmatpush1.msra.mxu0 0.0
    %759 = vmatprep.subr.mxu0 0.0
    %760 = vmatpush1.msra.mxu0 0.0
    %761 = vmatprep.subr.mxu0 0.0
    %762 = vmatpush1.msra.mxu0 0.0
    %763 = vmatprep.subr.mxu0 0.0
    %764 = vmatpush1.msra.mxu0 0.0
    %765 = vmatprep.subr.mxu0 0.0
    %766 = vmatpush1.msra.mxu0 0.0
    %767 = vmatprep.subr.mxu0 0.0
    %768 = vmatpush1.msra.mxu0 0.0
    %769 = vmatprep.subr.mxu0 0.0
    %770 = vmatpush1.msra.mxu0 0.0
    %771 = vmatprep.subr.mxu0 0.0
    %772 = vmatpush1.msra.mxu0 0.0
    %773 = vmatprep.subr.mxu0 0.0
    %774 = vmatpush1.msra.mxu0 0.0
    %775 = vmatprep.subr.mxu0 0.0
    %776 = vmatpush1.msra.mxu0 0.0
    %777 = vmatprep.subr.mxu0 0.0
    %778 = vmatpush1.msra.mxu0 0.0
    %779 = vmatprep.mubr.f32.mxu0 0.0
    %780 = vmatmul.mubr.f32.gmra.mrb[0].mxu0 %v639
    %v781 = vpop.f32.mrb[0].mxu0
    %v782 = vadd.f32 0.0, %v781
    %v783 = vpop.f32.mrb[0].mxu0
    %v784 = vadd.f32 0.0, %v783
    %785 = vdwg.mxu0
    %v786 = vadd.f32 %v640, %v711
    %v787 = vadd.f32 %v641, %v713
    %v788 = vadd.f32 %v642, %v782
    %v789 = vadd.f32 %v643, %v784
    %v790 = vxor.u32 %v786, 2147483648
    %v791 = vmul.f32 %v790, 1.442695
    %v792 = vpow.pop %v791
    %v793 = vadd.f32 %v792, 1.0
    %v794 = vrcp.pop %v793
    %v795 = vmul.f32 1.0, %v794
    %v796 = vxor.u32 %v787, 2147483648
    %v797 = vmul.f32 %v796, 1.442695
    %v798 = vpow.pop %v797
    %v799 = vadd.f32 %v798, 1.0
    %v800 = vrcp.pop %v799
    %v801 = vmul.f32 1.0, %v800
    %v802 = vtanh.pop %v788
    %v803 = vxor.u32 %v789, 2147483648
    %v804 = vmul.f32 %v803, 1.442695
    %v805 = vpow.pop %v804
    %v806 = vadd.f32 %v805, 1.0
    %v807 = vrcp.pop %v806
    %v808 = vmul.f32 1.0, %v807
    %v809 = vmul.f32 %v801, %v637
    %v810 = vmul.f32 %v795, %v802
    %v811 = vadd.f32 %v809, %v810
    %v812 = vtanh.pop %v811
    %v813 = vmul.f32 %v808, %v812
    %v814 = vld [vmem:[#allocation2 + $0x40] sm:$0xff]
    %v815 = vld [vmem:[#allocation2 + $0x48] sm:$0xff]
    %v816 = vld [vmem:[#allocation2 + $0x50] sm:$0xff]
    %v817 = vld [vmem:[#allocation2 + $0x58] sm:$0xff]
    %818 = vmatprep.subr.mxu0 %v407
    %819 = vmatpush1.msra.mxu0 %v406
    %820 = vmatprep.subr.mxu0 %v411
    %821 = vmatpush1.msra.mxu0 %v410
    %822 = vmatprep.subr.mxu0 %v415
    %823 = vmatpush1.msra.mxu0 %v414
    %824 = vmatprep.subr.mxu0 %v419
    %825 = vmatpush1.msra.mxu0 %v418
    %826 = vmatprep.subr.mxu0 %v423
    %827 = vmatpush1.msra.mxu0 %v422
    %828 = vmatprep.subr.mxu0 %v427
    %829 = vmatpush1.msra.mxu0 %v426
    %830 = vmatprep.subr.mxu0 %v431
    %831 = vmatpush1.msra.mxu0 %v430
    %832 = vmatprep.subr.mxu0 %v435
    %833 = vmatpush1.msra.mxu0 %v434
    %834 = vmatprep.subr.mxu0 %v439
    %835 = vmatpush1.msra.mxu0 %v438
    %836 = vmatprep.subr.mxu0 %v443
    %837 = vmatpush1.msra.mxu0 %v442
    %838 = vmatprep.subr.mxu0 %v447
    %839 = vmatpush1.msra.mxu0 %v446
    %840 = vmatprep.subr.mxu0 %v451
    %841 = vmatpush1.msra.mxu0 %v450
    %842 = vmatprep.subr.mxu0 %v455
    %843 = vmatpush1.msra.mxu0 %v454
    %844 = vmatprep.subr.mxu0 %v459
    %845 = vmatpush1.msra.mxu0 %v458
    %846 = vmatprep.subr.mxu0 %v463
    %847 = vmatpush1.msra.mxu0 %v462
    %848 = vmatprep.subr.mxu0 %v467
    %849 = vmatpush1.msra.mxu0 %v466
    %850 = vmatprep.subr.mxu0 0.0
    %851 = vmatpush1.msra.mxu0 0.0
    %852 = vmatprep.subr.mxu0 0.0
    %853 = vmatpush1.msra.mxu0 0.0
    %854 = vmatprep.subr.mxu0 0.0
    %855 = vmatpush1.msra.mxu0 0.0
    %856 = vmatprep.subr.mxu0 0.0
    %857 = vmatpush1.msra.mxu0 0.0
    %858 = vmatprep.subr.mxu0 0.0
    %859 = vmatpush1.msra.mxu0 0.0
    %860 = vmatprep.subr.mxu0 0.0
    %861 = vmatpush1.msra.mxu0 0.0
    %862 = vmatprep.subr.mxu0 0.0
    %863 = vmatpush1.msra.mxu0 0.0
    %864 = vmatprep.subr.mxu0 0.0
    %865 = vmatpush1.msra.mxu0 0.0
    %866 = vmatprep.subr.mxu0 0.0
    %867 = vmatpush1.msra.mxu0 0.0
    %868 = vmatprep.subr.mxu0 0.0
    %869 = vmatpush1.msra.mxu0 0.0
    %870 = vmatprep.subr.mxu0 0.0
    %871 = vmatpush1.msra.mxu0 0.0
    %872 = vmatprep.subr.mxu0 0.0
    %873 = vmatpush1.msra.mxu0 0.0
    %874 = vmatprep.subr.mxu0 0.0
    %875 = vmatpush1.msra.mxu0 0.0
    %876 = vmatprep.subr.mxu0 0.0
    %877 = vmatpush1.msra.mxu0 0.0
    %878 = vmatprep.subr.mxu0 0.0
    %879 = vmatpush1.msra.mxu0 0.0
    %880 = vmatprep.subr.mxu0 0.0
    %881 = vmatpush1.msra.mxu0 0.0
    %882 = vmatprep.mubr.f32.mxu0 0.0
    %883 = vmatmul.mubr.f32.gmra.mrb[0].mxu0 %v813
    %v884 = vpop.f32.mrb[0].mxu0
    %v885 = vadd.f32 0.0, %v884
    %v886 = vpop.f32.mrb[0].mxu0
    %v887 = vadd.f32 0.0, %v886
    %888 = vdwg.mxu0
    %889 = vmatprep.subr.mxu0 %v409
    %890 = vmatpush1.msra.mxu0 %v408
    %891 = vmatprep.subr.mxu0 %v413
    %892 = vmatpush1.msra.mxu0 %v412
    %893 = vmatprep.subr.mxu0 %v417
    %894 = vmatpush1.msra.mxu0 %v416
    %895 = vmatprep.subr.mxu0 %v421
    %896 = vmatpush1.msra.mxu0 %v420
    %897 = vmatprep.subr.mxu0 %v425
    %898 = vmatpush1.msra.mxu0 %v424
    %899 = vmatprep.subr.mxu0 %v429
    %900 = vmatpush1.msra.mxu0 %v428
    %901 = vmatprep.subr.mxu0 %v433
    %902 = vmatpush1.msra.mxu0 %v432
    %903 = vmatprep.subr.mxu0 %v437
    %904 = vmatpush1.msra.mxu0 %v436
    %905 = vmatprep.subr.mxu0 %v441
    %906 = vmatpush1.msra.mxu0 %v440
    %907 = vmatprep.subr.mxu0 %v445
    %908 = vmatpush1.msra.mxu0 %v444
    %909 = vmatprep.subr.mxu0 %v449
    %910 = vmatpush1.msra.mxu0 %v448
    %911 = vmatprep.subr.mxu0 %v453
    %912 = vmatpush1.msra.mxu0 %v452
    %913 = vmatprep.subr.mxu0 %v457
    %914 = vmatpush1.msra.mxu0 %v456
    %915 = vmatprep.subr.mxu0 %v461
    %916 = vmatpush1.msra.mxu0 %v460
    %917 = vmatprep.subr.mxu0 %v465
    %918 = vmatpush1.msra.mxu0 %v464
    %919 = vmatprep.subr.mxu0 %v469
    %920 = vmatpush1.msra.mxu0 %v468
    %921 = vmatprep.subr.mxu0 0.0
    %922 = vmatpush1.msra.mxu0 0.0
    %923 = vmatprep.subr.mxu0 0.0
    %924 = vmatpush1.msra.mxu0 0.0
    %925 = vmatprep.subr.mxu0 0.0
    %926 = vmatpush1.msra.mxu0 0.0
    %927 = vmatprep.subr.mxu0 0.0
    %928 = vmatpush1.msra.mxu0 0.0
    %929 = vmatprep.subr.mxu0 0.0
    %930 = vmatpush1.msra.mxu0 0.0
    %931 = vmatprep.subr.mxu0 0.0
    %932 = vmatpush1.msra.mxu0 0.0
    %933 = vmatprep.subr.mxu0 0.0
    %934 = vmatpush1.msra.mxu0 0.0
    %935 = vmatprep.subr.mxu0 0.0
    %936 = vmatpush1.msra.mxu0 0.0
    %937 = vmatprep.subr.mxu0 0.0
    %938 = vmatpush1.msra.mxu0 0.0
    %939 = vmatprep.subr.mxu0 0.0
    %940 = vmatpush1.msra.mxu0 0.0
    %941 = vmatprep.subr.mxu0 0.0
    %942 = vmatpush1.msra.mxu0 0.0
    %943 = vmatprep.subr.mxu0 0.0
    %944 = vmatpush1.msra.mxu0 0.0
    %945 = vmatprep.subr.mxu0 0.0
    %946 = vmatpush1.msra.mxu0 0.0
    %947 = vmatprep.subr.mxu0 0.0
    %948 = vmatpush1.msra.mxu0 0.0
    %949 = vmatprep.subr.mxu0 0.0
    %950 = vmatpush1.msra.mxu0 0.0
    %951 = vmatprep.subr.mxu0 0.0
    %952 = vmatpush1.msra.mxu0 0.0
    %953 = vmatprep.mubr.f32.mxu0 0.0
    %954 = vmatmul.mubr.f32.gmra.mrb[0].mxu0 %v813
    %v955 = vpop.f32.mrb[0].mxu0
    %v956 = vadd.f32 0.0, %v955
    %v957 = vpop.f32.mrb[0].mxu0
    %v958 = vadd.f32 0.0, %v957
    %959 = vdwg.mxu0
    %v960 = vadd.f32 %v814, %v885
    %v961 = vadd.f32 %v815, %v887
    %v962 = vadd.f32 %v816, %v956
    %v963 = vadd.f32 %v817, %v958
    %v964 = vxor.u32 %v960, 2147483648
    %v965 = vmul.f32 %v964, 1.442695
    %v966 = vpow.pop %v965
    %v967 = vadd.f32 %v966, 1.0
    %v968 = vrcp.pop %v967
    %v969 = vmul.f32 1.0, %v968
    %v970 = vxor.u32 %v961, 2147483648
    %v971 = vmul.f32 %v970, 1.442695
    %v972 = vpow.pop %v971
    %v973 = vadd.f32 %v972, 1.0
    %v974 = vrcp.pop %v973
    %v975 = vmul.f32 1.0, %v974
    %v976 = vtanh.pop %v962
    %v977 = vxor.u32 %v963, 2147483648
    %v978 = vmul.f32 %v977, 1.442695
    %v979 = vpow.pop %v978
    %v980 = vadd.f32 %v979, 1.0
    %v981 = vrcp.pop %v980
    %v982 = vmul.f32 1.0, %v981
    %v983 = vmul.f32 %v975, %v811
    %v984 = vmul.f32 %v969, %v976
    %v985 = vadd.f32 %v983, %v984
    %v986 = vtanh.pop %v985
    %v987 = vmul.f32 %v982, %v986
    %v988 = vld [vmem:[#allocation2 + $0x60] sm:$0xff]
    %v989 = vld [vmem:[#allocation2 + $0x68] sm:$0xff]
    %v990 = vld [vmem:[#allocation2 + $0x70] sm:$0xff]
    %v991 = vld [vmem:[#allocation2 + $0x78] sm:$0xff]
    %992 = vmatprep.subr.mxu0 %v407
    %993 = vmatpush1.msra.mxu0 %v406
    %994 = vmatprep.subr.mxu0 %v411
    %995 = vmatpush1.msra.mxu0 %v410
    %996 = vmatprep.subr.mxu0 %v415
    %997 = vmatpush1.msra.mxu0 %v414
    %998 = vmatprep.subr.mxu0 %v419
    %999 = vmatpush1.msra.mxu0 %v418
    %1000 = vmatprep.subr.mxu0 %v423
    %1001 = vmatpush1.msra.mxu0 %v422
    %1002 = vmatprep.subr.mxu0 %v427
    %1003 = vmatpush1.msra.mxu0 %v426
    %1004 = vmatprep.subr.mxu0 %v431
    %1005 = vmatpush1.msra.mxu0 %v430
    %1006 = vmatprep.subr.mxu0 %v435
    %1007 = vmatpush1.msra.mxu0 %v434
    %1008 = vmatprep.subr.mxu0 %v439
    %1009 = vmatpush1.msra.mxu0 %v438
    %1010 = vmatprep.subr.mxu0 %v443
    %1011 = vmatpush1.msra.mxu0 %v442
    %1012 = vmatprep.subr.mxu0 %v447
    %1013 = vmatpush1.msra.mxu0 %v446
    %1014 = vmatprep.subr.mxu0 %v451
    %1015 = vmatpush1.msra.mxu0 %v450
    %1016 = vmatprep.subr.mxu0 %v455
    %1017 = vmatpush1.msra.mxu0 %v454
    %1018 = vmatprep.subr.mxu0 %v459
    %1019 = vmatpush1.msra.mxu0 %v458
    %1020 = vmatprep.subr.mxu0 %v463
    %1021 = vmatpush1.msra.mxu0 %v462
    %1022 = vmatprep.subr.mxu0 %v467
    %1023 = vmatpush1.msra.mxu0 %v466
    %1024 = vmatprep.subr.mxu0 0.0
    %1025 = vmatpush1.msra.mxu0 0.0
    %1026 = vmatprep.subr.mxu0 0.0
    %1027 = vmatpush1.msra.mxu0 0.0
    %1028 = vmatprep.subr.mxu0 0.0
    %1029 = vmatpush1.msra.mxu0 0.0
    %1030 = vmatprep.subr.mxu0 0.0
    %1031 = vmatpush1.msra.mxu0 0.0
    %1032 = vmatprep.subr.mxu0 0.0
    %1033 = vmatpush1.msra.mxu0 0.0
    %1034 = vmatprep.subr.mxu0 0.0
    %1035 = vmatpush1.msra.mxu0 0.0
    %1036 = vmatprep.subr.mxu0 0.0
    %1037 = vmatpush1.msra.mxu0 0.0
    %1038 = vmatprep.subr.mxu0 0.0
    %1039 = vmatpush1.msra.mxu0 0.0
    %1040 = vmatprep.subr.mxu0 0.0
    %1041 = vmatpush1.msra.mxu0 0.0
    %1042 = vmatprep.subr.mxu0 0.0
    %1043 = vmatpush1.msra.mxu0 0.0
    %1044 = vmatprep.subr.mxu0 0.0
    %1045 = vmatpush1.msra.mxu0 0.0
    %1046 = vmatprep.subr.mxu0 0.0
    %1047 = vmatpush1.msra.mxu0 0.0
    %1048 = vmatprep.subr.mxu0 0.0
    %1049 = vmatpush1.msra.mxu0 0.0
    %1050 = vmatprep.subr.mxu0 0.0
    %1051 = vmatpush1.msra.mxu0 0.0
    %1052 = vmatprep.subr.mxu0 0.0
    %1053 = vmatpush1.msra.mxu0 0.0
    %1054 = vmatprep.subr.mxu0 0.0
    %1055 = vmatpush1.msra.mxu0 0.0
    %1056 = vmatprep.mubr.f32.mxu0 0.0
    %1057 = vmatmul.mubr.f32.gmra.mrb[0].mxu0 %v987
    %v1058 = vpop.f32.mrb[0].mxu0
    %v1059 = vadd.f32 0.0, %v1058
    %v1060 = vpop.f32.mrb[0].mxu0
    %v1061 = vadd.f32 0.0, %v1060
    %1062 = vdwg.mxu0
    %1063 = vmatprep.subr.mxu0 %v409
    %1064 = vmatpush1.msra.mxu0 %v408
    %1065 = vmatprep.subr.mxu0 %v413
    %1066 = vmatpush1.msra.mxu0 %v412
    %1067 = vmatprep.subr.mxu0 %v417
    %1068 = vmatpush1.msra.mxu0 %v416
    %1069 = vmatprep.subr.mxu0 %v421
    %1070 = vmatpush1.msra.mxu0 %v420
    %1071 = vmatprep.subr.mxu0 %v425
    %1072 = vmatpush1.msra.mxu0 %v424
    %1073 = vmatprep.subr.mxu0 %v429
    %1074 = vmatpush1.msra.mxu0 %v428
    %1075 = vmatprep.subr.mxu0 %v433
    %1076 = vmatpush1.msra.mxu0 %v432
    %1077 = vmatprep.subr.mxu0 %v437
    %1078 = vmatpush1.msra.mxu0 %v436
    %1079 = vmatprep.subr.mxu0 %v441
    %1080 = vmatpush1.msra.mxu0 %v440
    %1081 = vmatprep.subr.mxu0 %v445
    %1082 = vmatpush1.msra.mxu0 %v444
    %1083 = vmatprep.subr.mxu0 %v449
    %1084 = vmatpush1.msra.mxu0 %v448
    %1085 = vmatprep.subr.mxu0 %v453
    %1086 = vmatpush1.msra.mxu0 %v452
    %1087 = vmatprep.subr.mxu0 %v457
    %1088 = vmatpush1.msra.mxu0 %v456
    %1089 = vmatprep.subr.mxu0 %v461
    %1090 = vmatpush1.msra.mxu0 %v460
    %1091 = vmatprep.subr.mxu0 %v465
    %1092 = vmatpush1.msra.mxu0 %v464
    %1093 = vmatprep.subr.mxu0 %v469
    %1094 = vmatpush1.msra.mxu0 %v468
    %1095 = vmatprep.subr.mxu0 0.0
    %1096 = vmatpush1.msra.mxu0 0.0
    %1097 = vmatprep.subr.mxu0 0.0
    %1098 = vmatpush1.msra.mxu0 0.0
    %1099 = vmatprep.subr.mxu0 0.0
    %1100 = vmatpush1.msra.mxu0 0.0
    %1101 = vmatprep.subr.mxu0 0.0
    %1102 = vmatpush1.msra.mxu0 0.0
    %1103 = vmatprep.subr.mxu0 0.0
    %1104 = vmatpush1.msra.mxu0 0.0
    %1105 = vmatprep.subr.mxu0 0.0
    %1106 = vmatpush1.msra.mxu0 0.0
    %1107 = vmatprep.subr.mxu0 0.0
    %1108 = vmatpush1.msra.mxu0 0.0
    %1109 = vmatprep.subr.mxu0 0.0
    %1110 = vmatpush1.msra.mxu0 0.0
    %1111 = vmatprep.subr.mxu0 0.0
    %1112 = vmatpush1.msra.mxu0 0.0
    %1113 = vmatprep.subr.mxu0 0.0
    %1114 = vmatpush1.msra.mxu0 0.0
    %1115 = vmatprep.subr.mxu0 0.0
    %1116 = vmatpush1.msra.mxu0 0.0
    %1117 = vmatprep.subr.mxu0 0.0
    %1118 = vmatpush1.msra.mxu0 0.0
    %1119 = vmatprep.subr.mxu0 0.0
    %1120 = vmatpush1.msra.mxu0 0.0
    %1121 = vmatprep.subr.mxu0 0.0
    %1122 = vmatpush1.msra.mxu0 0.0
    %1123 = vmatprep.subr.mxu0 0.0
    %1124 = vmatpush1.msra.mxu0 0.0
    %1125 = vmatprep.subr.mxu0 0.0
    %1126 = vmatpush1.msra.mxu0 0.0
    %1127 = vmatprep.mubr.f32.mxu0 0.0
    %1128 = vmatmul.mubr.f32.gmra.mrb[0].mxu0 %v987
    %v1129 = vpop.f32.mrb[0].mxu0
    %v1130 = vadd.f32 0.0, %v1129
    %v1131 = vpop.f32.mrb[0].mxu0
    %v1132 = vadd.f32 0.0, %v1131
    %1133 = vdwg.mxu0
    %v1134 = vadd.f32 %v988, %v1059
    %v1135 = vadd.f32 %v989, %v1061
    %v1136 = vadd.f32 %v990, %v1130
    %v1137 = vadd.f32 %v991, %v1132
    %v1138 = vxor.u32 %v1134, 2147483648
    %v1139 = vmul.f32 %v1138, 1.442695
    %v1140 = vpow.pop %v1139
    %v1141 = vadd.f32 %v1140, 1.0
    %v1142 = vrcp.pop %v1141
    %v1143 = vmul.f32 1.0, %v1142
    %v1144 = vxor.u32 %v1135, 2147483648
    %v1145 = vmul.f32 %v1144, 1.442695
    %v1146 = vpow.pop %v1145
    %v1147 = vadd.f32 %v1146, 1.0
    %v1148 = vrcp.pop %v1147
    %v1149 = vmul.f32 1.0, %v1148
    %v1150 = vtanh.pop %v1136
    %v1151 = vxor.u32 %v1137, 2147483648
    %v1152 = vmul.f32 %v1151, 1.442695
    %v1153 = vpow.pop %v1152
    %v1154 = vadd.f32 %v1153, 1.0
    %v1155 = vrcp.pop %v1154
    %v1156 = vmul.f32 1.0, %v1155
    %v1157 = vmul.f32 %v1149, %v985
    %v1158 = vmul.f32 %v1143, %v1150
    %v1159 = vadd.f32 %v1157, %v1158
    %v1160 = vtanh.pop %v1159
    %v1161 = vmul.f32 %v1156, %v1160
    %v1162 = vld [vmem:[#allocation2 + $0x80] sm:$0xff]
    %v1163 = vld [vmem:[#allocation2 + $0x88] sm:$0xff]
    %v1164 = vld [vmem:[#allocation2 + $0x90] sm:$0xff]
    %v1165 = vld [vmem:[#allocation2 + $0x98] sm:$0xff]
    %1166 = vmatprep.subr.mxu0 %v407
    %1167 = vmatpush1.msra.mxu0 %v406
    %1168 = vmatprep.subr.mxu0 %v411
    %1169 = vmatpush1.msra.mxu0 %v410
    %1170 = vmatprep.subr.mxu0 %v415
    %1171 = vmatpush1.msra.mxu0 %v414
    %1172 = vmatprep.subr.mxu0 %v419
    %1173 = vmatpush1.msra.mxu0 %v418
    %1174 = vmatprep.subr.mxu0 %v423
    %1175 = vmatpush1.msra.mxu0 %v422
    %1176 = vmatprep.subr.mxu0 %v427
    %1177 = vmatpush1.msra.mxu0 %v426
    %1178 = vmatprep.subr.mxu0 %v431
    %1179 = vmatpush1.msra.mxu0 %v430
    %1180 = vmatprep.subr.mxu0 %v435
    %1181 = vmatpush1.msra.mxu0 %v434
    %1182 = vmatprep.subr.mxu0 %v439
    %1183 = vmatpush1.msra.mxu0 %v438
    %1184 = vmatprep.subr.mxu0 %v443
    %1185 = vmatpush1.msra.mxu0 %v442
    %1186 = vmatprep.subr.mxu0 %v447
    %1187 = vmatpush1.msra.mxu0 %v446
    %1188 = vmatprep.subr.mxu0 %v451
    %1189 = vmatpush1.msra.mxu0 %v450
    %1190 = vmatprep.subr.mxu0 %v455
    %1191 = vmatpush1.msra.mxu0 %v454
    %1192 = vmatprep.subr.mxu0 %v459
    %1193 = vmatpush1.msra.mxu0 %v458
    %1194 = vmatprep.subr.mxu0 %v463
    %1195 = vmatpush1.msra.mxu0 %v462
    %1196 = vmatprep.subr.mxu0 %v467
    %1197 = vmatpush1.msra.mxu0 %v466
    %1198 = vmatprep.subr.mxu0 0.0
    %1199 = vmatpush1.msra.mxu0 0.0
    %1200 = vmatprep.subr.mxu0 0.0
    %1201 = vmatpush1.msra.mxu0 0.0
    %1202 = vmatprep.subr.mxu0 0.0
    %1203 = vmatpush1.msra.mxu0 0.0
    %1204 = vmatprep.subr.mxu0 0.0
    %1205 = vmatpush1.msra.mxu0 0.0
    %1206 = vmatprep.subr.mxu0 0.0
    %1207 = vmatpush1.msra.mxu0 0.0
    %1208 = vmatprep.subr.mxu0 0.0
    %1209 = vmatpush1.msra.mxu0 0.0
    %1210 = vmatprep.subr.mxu0 0.0
    %1211 = vmatpush1.msra.mxu0 0.0
    %1212 = vmatprep.subr.mxu0 0.0
    %1213 = vmatpush1.msra.mxu0 0.0
    %1214 = vmatprep.subr.mxu0 0.0
    %1215 = vmatpush1.msra.mxu0 0.0
    %1216 = vmatprep.subr.mxu0 0.0
    %1217 = vmatpush1.msra.mxu0 0.0
    %1218 = vmatprep.subr.mxu0 0.0
    %1219 = vmatpush1.msra.mxu0 0.0
    %1220 = vmatprep.subr.mxu0 0.0
    %1221 = vmatpush1.msra.mxu0 0.0
    %1222 = vmatprep.subr.mxu0 0.0
    %1223 = vmatpush1.msra.mxu0 0.0
    %1224 = vmatprep.subr.mxu0 0.0
    %1225 = vmatpush1.msra.mxu0 0.0
    %1226 = vmatprep.subr.mxu0 0.0
    %1227 = vmatpush1.msra.mxu0 0.0
    %1228 = vmatprep.subr.mxu0 0.0
    %1229 = vmatpush1.msra.mxu0 0.0
    %1230 = vmatprep.mubr.f32.mxu0 0.0
    %1231 = vmatmul.mubr.f32.gmra.mrb[0].mxu0 %v1161
    %v1232 = vpop.f32.mrb[0].mxu0
    %v1233 = vadd.f32 0.0, %v1232
    %v1234 = vpop.f32.mrb[0].mxu0
    %v1235 = vadd.f32 0.0, %v1234
    %1236 = vdwg.mxu0
    %1237 = vmatprep.subr.mxu0 %v409
    %1238 = vmatpush1.msra.mxu0 %v408
    %1239 = vmatprep.subr.mxu0 %v413
    %1240 = vmatpush1.msra.mxu0 %v412
    %1241 = vmatprep.subr.mxu0 %v417
    %1242 = vmatpush1.msra.mxu0 %v416
    %1243 = vmatprep.subr.mxu0 %v421
    %1244 = vmatpush1.msra.mxu0 %v420
    %1245 = vmatprep.subr.mxu0 %v425
    %1246 = vmatpush1.msra.mxu0 %v424
    %1247 = vmatprep.subr.mxu0 %v429
    %1248 = vmatpush1.msra.mxu0 %v428
    %1249 = vmatprep.subr.mxu0 %v433
    %1250 = vmatpush1.msra.mxu0 %v432
    %1251 = vmatprep.subr.mxu0 %v437
    %1252 = vmatpush1.msra.mxu0 %v436
    %1253 = vmatprep.subr.mxu0 %v441
    %1254 = vmatpush1.msra.mxu0 %v440
    %1255 = vmatprep.subr.mxu0 %v445
    %1256 = vmatpush1.msra.mxu0 %v444
    %1257 = vmatprep.subr.mxu0 %v449
    %1258 = vmatpush1.msra.mxu0 %v448
    %1259 = vmatprep.subr.mxu0 %v453
    %1260 = vmatpush1.msra.mxu0 %v452
    %1261 = vmatprep.subr.mxu0 %v457
    %1262 = vmatpush1.msra.mxu0 %v456
    %1263 = vmatprep.subr.mxu0 %v461
    %1264 = vmatpush1.msra.mxu0 %v460
    %1265 = vmatprep.subr.mxu0 %v465
    %1266 = vmatpush1.msra.mxu0 %v464
    %1267 = vmatprep.subr.mxu0 %v469
    %1268 = vmatpush1.msra.mxu0 %v468
    %1269 = vmatprep.subr.mxu0 0.0
    %1270 = vmatpush1.msra.mxu0 0.0
    %1271 = vmatprep.subr.mxu0 0.0
    %1272 = vmatpush1.msra.mxu0 0.0
    %1273 = vmatprep.subr.mxu0 0.0
    %1274 = vmatpush1.msra.mxu0 0.0
    %1275 = vmatprep.subr.mxu0 0.0
    %1276 = vmatpush1.msra.mxu0 0.0
    %1277 = vmatprep.subr.mxu0 0.0
    %1278 = vmatpush1.msra.mxu0 0.0
    %1279 = vmatprep.subr.mxu0 0.0
    %1280 = vmatpush1.msra.mxu0 0.0
    %1281 = vmatprep.subr.mxu0 0.0
    %1282 = vmatpush1.msra.mxu0 0.0
    %1283 = vmatprep.subr.mxu0 0.0
    %1284 = vmatpush1.msra.mxu0 0.0
    %1285 = vmatprep.subr.mxu0 0.0
    %1286 = vmatpush1.msra.mxu0 0.0
    %1287 = vmatprep.subr.mxu0 0.0
    %1288 = vmatpush1.msra.mxu0 0.0
    %1289 = vmatprep.subr.mxu0 0.0
    %1290 = vmatpush1.msra.mxu0 0.0
    %1291 = vmatprep.subr.mxu0 0.0
    %1292 = vmatpush1.msra.mxu0 0.0
    %1293 = vmatprep.subr.mxu0 0.0
    %1294 = vmatpush1.msra.mxu0 0.0
    %1295 = vmatprep.subr.mxu0 0.0
    %1296 = vmatpush1.msra.mxu0 0.0
    %1297 = vmatprep.subr.mxu0 0.0
    %1298 = vmatpush1.msra.mxu0 0.0
    %1299 = vmatprep.subr.mxu0 0.0
    %1300 = vmatpush1.msra.mxu0 0.0
    %1301 = vmatprep.mubr.f32.mxu0 0.0
    %1302 = vmatmul.mubr.f32.gmra.mrb[0].mxu0 %v1161
    %v1303 = vpop.f32.mrb[0].mxu0
    %v1304 = vadd.f32 0.0, %v1303
    %v1305 = vpop.f32.mrb[0].mxu0
    %v1306 = vadd.f32 0.0, %v1305
    %1307 = vdwg.mxu0
    %v1308 = vadd.f32 %v1162, %v1233
    %v1309 = vadd.f32 %v1163, %v1235
    %v1310 = vadd.f32 %v1164, %v1304
    %v1311 = vadd.f32 %v1165, %v1306
    %v1312 = vxor.u32 %v1308, 2147483648
    %v1313 = vmul.f32 %v1312, 1.442695
    %v1314 = vpow.pop %v1313
    %v1315 = vadd.f32 %v1314, 1.0
    %v1316 = vrcp.pop %v1315
    %v1317 = vmul.f32 1.0, %v1316
    %v1318 = vxor.u32 %v1309, 2147483648
    %v1319 = vmul.f32 %v1318, 1.442695
    %v1320 = vpow.pop %v1319
    %v1321 = vadd.f32 %v1320, 1.0
    %v1322 = vrcp.pop %v1321
    %v1323 = vmul.f32 1.0, %v1322
    %v1324 = vtanh.pop %v1310
    %v1325 = vxor.u32 %v1311, 2147483648
    %v1326 = vmul.f32 %v1325, 1.442695
    %v1327 = vpow.pop %v1326
    %v1328 = vadd.f32 %v1327, 1.0
    %v1329 = vrcp.pop %v1328
    %v1330 = vmul.f32 1.0, %v1329
    %v1331 = vmul.f32 %v1323, %v1159
    %v1332 = vmul.f32 %v1317, %v1324
    %v1333 = vadd.f32 %v1331, %v1332
    %v1334 = vtanh.pop %v1333
    %v1335 = vmul.f32 %v1330, %v1334
    %v1336 = vld [vmem:[#allocation2 + $0xa0] sm:$0xff]
    %v1337 = vld [vmem:[#allocation2 + $0xa8] sm:$0xff]
    %v1338 = vld [vmem:[#allocation2 + $0xb0] sm:$0xff]
    %v1339 = vld [vmem:[#allocation2 + $0xb8] sm:$0xff]
    %1340 = vmatprep.subr.mxu0 %v407
    %1341 = vmatpush1.msra.mxu0 %v406
    %1342 = vmatprep.subr.mxu0 %v411
    %1343 = vmatpush1.msra.mxu0 %v410
    %1344 = vmatprep.subr.mxu0 %v415
    %1345 = vmatpush1.msra.mxu0 %v414
    %1346 = vmatprep.subr.mxu0 %v419
    %1347 = vmatpush1.msra.mxu0 %v418
    %1348 = vmatprep.subr.mxu0 %v423
    %1349 = vmatpush1.msra.mxu0 %v422
    %1350 = vmatprep.subr.mxu0 %v427
    %1351 = vmatpush1.msra.mxu0 %v426
    %1352 = vmatprep.subr.mxu0 %v431
    %1353 = vmatpush1.msra.mxu0 %v430
    %1354 = vmatprep.subr.mxu0 %v435
    %1355 = vmatpush1.msra.mxu0 %v434
    %1356 = vmatprep.subr.mxu0 %v439
    %1357 = vmatpush1.msra.mxu0 %v438
    %1358 = vmatprep.subr.mxu0 %v443
    %1359 = vmatpush1.msra.mxu0 %v442
    %1360 = vmatprep.subr.mxu0 %v447
    %1361 = vmatpush1.msra.mxu0 %v446
    %1362 = vmatprep.subr.mxu0 %v451
    %1363 = vmatpush1.msra.mxu0 %v450
    %1364 = vmatprep.subr.mxu0 %v455
    %1365 = vmatpush1.msra.mxu0 %v454
    %1366 = vmatprep.subr.mxu0 %v459
    %1367 = vmatpush1.msra.mxu0 %v458
    %1368 = vmatprep.subr.mxu0 %v463
    %1369 = vmatpush1.msra.mxu0 %v462
    %1370 = vmatprep.subr.mxu0 %v467
    %1371 = vmatpush1.msra.mxu0 %v466
    %1372 = vmatprep.subr.mxu0 0.0
    %1373 = vmatpush1.msra.mxu0 0.0
    %1374 = vmatprep.subr.mxu0 0.0
    %1375 = vmatpush1.msra.mxu0 0.0
    %1376 = vmatprep.subr.mxu0 0.0
    %1377 = vmatpush1.msra.mxu0 0.0
    %1378 = vmatprep.subr.mxu0 0.0
    %1379 = vmatpush1.msra.mxu0 0.0
    %1380 = vmatprep.subr.mxu0 0.0
    %1381 = vmatpush1.msra.mxu0 0.0
    %1382 = vmatprep.subr.mxu0 0.0
    %1383 = vmatpush1.msra.mxu0 0.0
    %1384 = vmatprep.subr.mxu0 0.0
    %1385 = vmatpush1.msra.mxu0 0.0
    %1386 = vmatprep.subr.mxu0 0.0
    %1387 = vmatpush1.msra.mxu0 0.0
    %1388 = vmatprep.subr.mxu0 0.0
    %1389 = vmatpush1.msra.mxu0 0.0
    %1390 = vmatprep.subr.mxu0 0.0
    %1391 = vmatpush1.msra.mxu0 0.0
    %1392 = vmatprep.subr.mxu0 0.0
    %1393 = vmatpush1.msra.mxu0 0.0
    %1394 = vmatprep.subr.mxu0 0.0
    %1395 = vmatpush1.msra.mxu0 0.0
    %1396 = vmatprep.subr.mxu0 0.0
    %1397 = vmatpush1.msra.mxu0 0.0
    %1398 = vmatprep.subr.mxu0 0.0
    %1399 = vmatpush1.msra.mxu0 0.0
    %1400 = vmatprep.subr.mxu0 0.0
    %1401 = vmatpush1.msra.mxu0 0.0
    %1402 = vmatprep.subr.mxu0 0.0
    %1403 = vmatpush1.msra.mxu0 0.0
    %1404 = vmatprep.mubr.f32.mxu0 0.0
    %1405 = vmatmul.mubr.f32.gmra.mrb[0].mxu0 %v1335
    %v1406 = vpop.f32.mrb[0].mxu0
    %v1407 = vadd.f32 0.0, %v1406
    %v1408 = vpop.f32.mrb[0].mxu0
    %v1409 = vadd.f32 0.0, %v1408
    %1410 = vdwg.mxu0
    %1411 = vmatprep.subr.mxu0 %v409
    %1412 = vmatpush1.msra.mxu0 %v408
    %1413 = vmatprep.subr.mxu0 %v413
    %1414 = vmatpush1.msra.mxu0 %v412
    %1415 = vmatprep.subr.mxu0 %v417
    %1416 = vmatpush1.msra.mxu0 %v416
    %1417 = vmatprep.subr.mxu0 %v421
    %1418 = vmatpush1.msra.mxu0 %v420
    %1419 = vmatprep.subr.mxu0 %v425
    %1420 = vmatpush1.msra.mxu0 %v424
    %1421 = vmatprep.subr.mxu0 %v429
    %1422 = vmatpush1.msra.mxu0 %v428
    %1423 = vmatprep.subr.mxu0 %v433
    %1424 = vmatpush1.msra.mxu0 %v432
    %1425 = vmatprep.subr.mxu0 %v437
    %1426 = vmatpush1.msra.mxu0 %v436
    %1427 = vmatprep.subr.mxu0 %v441
    %1428 = vmatpush1.msra.mxu0 %v440
    %1429 = vmatprep.subr.mxu0 %v445
    %1430 = vmatpush1.msra.mxu0 %v444
    %1431 = vmatprep.subr.mxu0 %v449
    %1432 = vmatpush1.msra.mxu0 %v448
    %1433 = vmatprep.subr.mxu0 %v453
    %1434 = vmatpush1.msra.mxu0 %v452
    %1435 = vmatprep.subr.mxu0 %v457
    %1436 = vmatpush1.msra.mxu0 %v456
    %1437 = vmatprep.subr.mxu0 %v461
    %1438 = vmatpush1.msra.mxu0 %v460
    %1439 = vmatprep.subr.mxu0 %v465
    %1440 = vmatpush1.msra.mxu0 %v464
    %1441 = vmatprep.subr.mxu0 %v469
    %1442 = vmatpush1.msra.mxu0 %v468
    %1443 = vmatprep.subr.mxu0 0.0
    %1444 = vmatpush1.msra.mxu0 0.0
    %1445 = vmatprep.subr.mxu0 0.0
    %1446 = vmatpush1.msra.mxu0 0.0
    %1447 = vmatprep.subr.mxu0 0.0
    %1448 = vmatpush1.msra.mxu0 0.0
    %1449 = vmatprep.subr.mxu0 0.0
    %1450 = vmatpush1.msra.mxu0 0.0
    %1451 = vmatprep.subr.mxu0 0.0
    %1452 = vmatpush1.msra.mxu0 0.0
    %1453 = vmatprep.subr.mxu0 0.0
    %1454 = vmatpush1.msra.mxu0 0.0
    %1455 = vmatprep.subr.mxu0 0.0
    %1456 = vmatpush1.msra.mxu0 0.0
    %1457 = vmatprep.subr.mxu0 0.0
    %1458 = vmatpush1.msra.mxu0 0.0
    %1459 = vmatprep.subr.mxu0 0.0
    %1460 = vmatpush1.msra.mxu0 0.0
    %1461 = vmatprep.subr.mxu0 0.0
    %1462 = vmatpush1.msra.mxu0 0.0
    %1463 = vmatprep.subr.mxu0 0.0
    %1464 = vmatpush1.msra.mxu0 0.0
    %1465 = vmatprep.subr.mxu0 0.0
    %1466 = vmatpush1.msra.mxu0 0.0
    %1467 = vmatprep.subr.mxu0 0.0
    %1468 = vmatpush1.msra.mxu0 0.0
    %1469 = vmatprep.subr.mxu0 0.0
    %1470 = vmatpush1.msra.mxu0 0.0
    %1471 = vmatprep.subr.mxu0 0.0
    %1472 = vmatpush1.msra.mxu0 0.0
    %1473 = vmatprep.subr.mxu0 0.0
    %1474 = vmatpush1.msra.mxu0 0.0
    %1475 = vmatprep.mubr.f32.mxu0 0.0
    %1476 = vmatmul.mubr.f32.gmra.mrb[0].mxu0 %v1335
    %v1477 = vpop.f32.mrb[0].mxu0
    %v1478 = vadd.f32 0.0, %v1477
    %v1479 = vpop.f32.mrb[0].mxu0
    %v1480 = vadd.f32 0.0, %v1479
    %1481 = vdwg.mxu0
    %v1482 = vadd.f32 %v1336, %v1407
    %v1483 = vadd.f32 %v1337, %v1409
    %v1484 = vadd.f32 %v1338, %v1478
    %v1485 = vadd.f32 %v1339, %v1480
    %v1486 = vxor.u32 %v1482, 2147483648
    %v1487 = vmul.f32 %v1486, 1.442695
    %v1488 = vpow.pop %v1487
    %v1489 = vadd.f32 %v1488, 1.0
    %v1490 = vrcp.pop %v1489
    %v1491 = vmul.f32 1.0, %v1490
    %v1492 = vxor.u32 %v1483, 2147483648
    %v1493 = vmul.f32 %v1492, 1.442695
    %v1494 = vpow.pop %v1493
    %v1495 = vadd.f32 %v1494, 1.0
    %v1496 = vrcp.pop %v1495
    %v1497 = vmul.f32 1.0, %v1496
    %v1498 = vtanh.pop %v1484
    %v1499 = vxor.u32 %v1485, 2147483648
    %v1500 = vmul.f32 %v1499, 1.442695
    %v1501 = vpow.pop %v1500
    %v1502 = vadd.f32 %v1501, 1.0
    %v1503 = vrcp.pop %v1502
    %v1504 = vmul.f32 1.0, %v1503
    %v1505 = vmul.f32 %v1497, %v1333
    %v1506 = vmul.f32 %v1491, %v1498
    %v1507 = vadd.f32 %v1505, %v1506
    %v1508 = vtanh.pop %v1507
    %v1509 = vmul.f32 %v1504, %v1508
    %v1510 = vld [vmem:[#allocation2 + $0xc0] sm:$0xff]
    %v1511 = vld [vmem:[#allocation2 + $0xc8] sm:$0xff]
    %v1512 = vld [vmem:[#allocation2 + $0xd0] sm:$0xff]
    %v1513 = vld [vmem:[#allocation2 + $0xd8] sm:$0xff]
    %1514 = vmatprep.subr.mxu0 %v407
    %1515 = vmatpush1.msra.mxu0 %v406
    %1516 = vmatprep.subr.mxu0 %v411
    %1517 = vmatpush1.msra.mxu0 %v410
    %1518 = vmatprep.subr.mxu0 %v415
    %1519 = vmatpush1.msra.mxu0 %v414
    %1520 = vmatprep.subr.mxu0 %v419
    %1521 = vmatpush1.msra.mxu0 %v418
    %1522 = vmatprep.subr.mxu0 %v423
    %1523 = vmatpush1.msra.mxu0 %v422
    %1524 = vmatprep.subr.mxu0 %v427
    %1525 = vmatpush1.msra.mxu0 %v426
    %1526 = vmatprep.subr.mxu0 %v431
    %1527 = vmatpush1.msra.mxu0 %v430
    %1528 = vmatprep.subr.mxu0 %v435
    %1529 = vmatpush1.msra.mxu0 %v434
    %1530 = vmatprep.subr.mxu0 %v439
    %1531 = vmatpush1.msra.mxu0 %v438
    %1532 = vmatprep.subr.mxu0 %v443
    %1533 = vmatpush1.msra.mxu0 %v442
    %1534 = vmatprep.subr.mxu0 %v447
    %1535 = vmatpush1.msra.mxu0 %v446
    %1536 = vmatprep.subr.mxu0 %v451
    %1537 = vmatpush1.msra.mxu0 %v450
    %1538 = vmatprep.subr.mxu0 %v455
    %1539 = vmatpush1.msra.mxu0 %v454
    %1540 = vmatprep.subr.mxu0 %v459
    %1541 = vmatpush1.msra.mxu0 %v458
    %1542 = vmatprep.subr.mxu0 %v463
    %1543 = vmatpush1.msra.mxu0 %v462
    %1544 = vmatprep.subr.mxu0 %v467
    %1545 = vmatpush1.msra.mxu0 %v466
    %1546 = vmatprep.subr.mxu0 0.0
    %1547 = vmatpush1.msra.mxu0 0.0
    %1548 = vmatprep.subr.mxu0 0.0
    %1549 = vmatpush1.msra.mxu0 0.0
    %1550 = vmatprep.subr.mxu0 0.0
    %1551 = vmatpush1.msra.mxu0 0.0
    %1552 = vmatprep.subr.mxu0 0.0
    %1553 = vmatpush1.msra.mxu0 0.0
    %1554 = vmatprep.subr.mxu0 0.0
    %1555 = vmatpush1.msra.mxu0 0.0
    %1556 = vmatprep.subr.mxu0 0.0
    %1557 = vmatpush1.msra.mxu0 0.0
    %1558 = vmatprep.subr.mxu0 0.0
    %1559 = vmatpush1.msra.mxu0 0.0
    %1560 = vmatprep.subr.mxu0 0.0
    %1561 = vmatpush1.msra.mxu0 0.0
    %1562 = vmatprep.subr.mxu0 0.0
    %1563 = vmatpush1.msra.mxu0 0.0
    %1564 = vmatprep.subr.mxu0 0.0
    %1565 = vmatpush1.msra.mxu0 0.0
    %1566 = vmatprep.subr.mxu0 0.0
    %1567 = vmatpush1.msra.mxu0 0.0
    %1568 = vmatprep.subr.mxu0 0.0
    %1569 = vmatpush1.msra.mxu0 0.0
    %1570 = vmatprep.subr.mxu0 0.0
    %1571 = vmatpush1.msra.mxu0 0.0
    %1572 = vmatprep.subr.mxu0 0.0
    %1573 = vmatpush1.msra.mxu0 0.0
    %1574 = vmatprep.subr.mxu0 0.0
    %1575 = vmatpush1.msra.mxu0 0.0
    %1576 = vmatprep.subr.mxu0 0.0
    %1577 = vmatpush1.msra.mxu0 0.0
    %1578 = vmatprep.mubr.f32.mxu0 0.0
    %1579 = vmatmul.mubr.f32.gmra.mrb[0].mxu0 %v1509
    %v1580 = vpop.f32.mrb[0].mxu0
    %v1581 = vadd.f32 0.0, %v1580
    %v1582 = vpop.f32.mrb[0].mxu0
    %v1583 = vadd.f32 0.0, %v1582
    %1584 = vdwg.mxu0
    %1585 = vmatprep.subr.mxu0 %v409
    %1586 = vmatpush1.msra.mxu0 %v408
    %1587 = vmatprep.subr.mxu0 %v413
    %1588 = vmatpush1.msra.mxu0 %v412
    %1589 = vmatprep.subr.mxu0 %v417
    %1590 = vmatpush1.msra.mxu0 %v416
    %1591 = vmatprep.subr.mxu0 %v421
    %1592 = vmatpush1.msra.mxu0 %v420
    %1593 = vmatprep.subr.mxu0 %v425
    %1594 = vmatpush1.msra.mxu0 %v424
    %1595 = vmatprep.subr.mxu0 %v429
    %1596 = vmatpush1.msra.mxu0 %v428
    %1597 = vmatprep.subr.mxu0 %v433
    %1598 = vmatpush1.msra.mxu0 %v432
    %1599 = vmatprep.subr.mxu0 %v437
    %1600 = vmatpush1.msra.mxu0 %v436
    %1601 = vmatprep.subr.mxu0 %v441
    %1602 = vmatpush1.msra.mxu0 %v440
    %1603 = vmatprep.subr.mxu0 %v445
    %1604 = vmatpush1.msra.mxu0 %v444
    %1605 = vmatprep.subr.mxu0 %v449
    %1606 = vmatpush1.msra.mxu0 %v448
    %1607 = vmatprep.subr.mxu0 %v453
    %1608 = vmatpush1.msra.mxu0 %v452
    %1609 = vmatprep.subr.mxu0 %v457
    %1610 = vmatpush1.msra.mxu0 %v456
    %1611 = vmatprep.subr.mxu0 %v461
    %1612 = vmatpush1.msra.mxu0 %v460
    %1613 = vmatprep.subr.mxu0 %v465
    %1614 = vmatpush1.msra.mxu0 %v464
    %1615 = vmatprep.subr.mxu0 %v469
    %1616 = vmatpush1.msra.mxu0 %v468
    %1617 = vmatprep.subr.mxu0 0.0
    %1618 = vmatpush1.msra.mxu0 0.0
    %1619 = vmatprep.subr.mxu0 0.0
    %1620 = vmatpush1.msra.mxu0 0.0
    %1621 = vmatprep.subr.mxu0 0.0
    %1622 = vmatpush1.msra.mxu0 0.0
    %1623 = vmatprep.subr.mxu0 0.0
    %1624 = vmatpush1.msra.mxu0 0.0
    %1625 = vmatprep.subr.mxu0 0.0
    %1626 = vmatpush1.msra.mxu0 0.0
    %1627 = vmatprep.subr.mxu0 0.0
    %1628 = vmatpush1.msra.mxu0 0.0
    %1629 = vmatprep.subr.mxu0 0.0
    %1630 = vmatpush1.msra.mxu0 0.0
    %1631 = vmatprep.subr.mxu0 0.0
    %1632 = vmatpush1.msra.mxu0 0.0
    %1633 = vmatprep.subr.mxu0 0.0
    %1634 = vmatpush1.msra.mxu0 0.0
    %1635 = vmatprep.subr.mxu0 0.0
    %1636 = vmatpush1.msra.mxu0 0.0
    %1637 = vmatprep.subr.mxu0 0.0
    %1638 = vmatpush1.msra.mxu0 0.0
    %1639 = vmatprep.subr.mxu0 0.0
    %1640 = vmatpush1.msra.mxu0 0.0
    %1641 = vmatprep.subr.mxu0 0.0
    %1642 = vmatpush1.msra.mxu0 0.0
    %1643 = vmatprep.subr.mxu0 0.0
    %1644 = vmatpush1.msra.mxu0 0.0
    %1645 = vmatprep.subr.mxu0 0.0
    %1646 = vmatpush1.msra.mxu0 0.0
    %1647 = vmatprep.subr.mxu0 0.0
    %1648 = vmatpush1.msra.mxu0 0.0
    %1649 = vmatprep.mubr.f32.mxu0 0.0
    %1650 = vmatmul.mubr.f32.gmra.mrb[0].mxu0 %v1509
    %v1651 = vpop.f32.mrb[0].mxu0
    %v1652 = vadd.f32 0.0, %v1651
    %v1653 = vpop.f32.mrb[0].mxu0
    %v1654 = vadd.f32 0.0, %v1653
    %1655 = vdwg.mxu0
    %v1656 = vadd.f32 %v1510, %v1581
    %v1657 = vadd.f32 %v1511, %v1583
    %v1658 = vadd.f32 %v1512, %v1652
    %v1659 = vadd.f32 %v1513, %v1654
    %v1660 = vxor.u32 %v1656, 2147483648
    %v1661 = vmul.f32 %v1660, 1.442695
    %v1662 = vpow.pop %v1661
    %v1663 = vadd.f32 %v1662, 1.0
    %v1664 = vrcp.pop %v1663
    %v1665 = vmul.f32 1.0, %v1664
    %v1666 = vxor.u32 %v1657, 2147483648
    %v1667 = vmul.f32 %v1666, 1.442695
    %v1668 = vpow.pop %v1667
    %v1669 = vadd.f32 %v1668, 1.0
    %v1670 = vrcp.pop %v1669
    %v1671 = vmul.f32 1.0, %v1670
    %v1672 = vtanh.pop %v1658
    %v1673 = vxor.u32 %v1659, 2147483648
    %v1674 = vmul.f32 %v1673, 1.442695
    %v1675 = vpow.pop %v1674
    %v1676 = vadd.f32 %v1675, 1.0
    %v1677 = vrcp.pop %v1676
    %v1678 = vmul.f32 1.0, %v1677
    %v1679 = vmul.f32 %v1671, %v1507
    %v1680 = vmul.f32 %v1665, %v1672
    %v1681 = vadd.f32 %v1679, %v1680
    %v1682 = vtanh.pop %v1681
    %v1683 = vmul.f32 %v1678, %v1682
    %v1684 = vld [vmem:[#allocation2 + $0xe0] sm:$0xff]
    %v1685 = vld [vmem:[#allocation2 + $0xe8] sm:$0xff]
    %v1686 = vld [vmem:[#allocation2 + $0xf0] sm:$0xff]
    %v1687 = vld [vmem:[#allocation2 + $0xf8] sm:$0xff]
    %1688 = vmatprep.subr.mxu0 %v407
    %1689 = vmatpush1.msra.mxu0 %v406
    %1690 = vmatprep.subr.mxu0 %v411
    %1691 = vmatpush1.msra.mxu0 %v410
    %1692 = vmatprep.subr.mxu0 %v415
    %1693 = vmatpush1.msra.mxu0 %v414
    %1694 = vmatprep.subr.mxu0 %v419
    %1695 = vmatpush1.msra.mxu0 %v418
    %1696 = vmatprep.subr.mxu0 %v423
    %1697 = vmatpush1.msra.mxu0 %v422
    %1698 = vmatprep.subr.mxu0 %v427
    %1699 = vmatpush1.msra.mxu0 %v426
    %1700 = vmatprep.subr.mxu0 %v431
    %1701 = vmatpush1.msra.mxu0 %v430
    %1702 = vmatprep.subr.mxu0 %v435
    %1703 = vmatpush1.msra.mxu0 %v434
    %1704 = vmatprep.subr.mxu0 %v439
    %1705 = vmatpush1.msra.mxu0 %v438
    %1706 = vmatprep.subr.mxu0 %v443
    %1707 = vmatpush1.msra.mxu0 %v442
    %1708 = vmatprep.subr.mxu0 %v447
    %1709 = vmatpush1.msra.mxu0 %v446
    %1710 = vmatprep.subr.mxu0 %v451
    %1711 = vmatpush1.msra.mxu0 %v450
    %1712 = vmatprep.subr.mxu0 %v455
    %1713 = vmatpush1.msra.mxu0 %v454
    %1714 = vmatprep.subr.mxu0 %v459
    %1715 = vmatpush1.msra.mxu0 %v458
    %1716 = vmatprep.subr.mxu0 %v463
    %1717 = vmatpush1.msra.mxu0 %v462
    %1718 = vmatprep.subr.mxu0 %v467
    %1719 = vmatpush1.msra.mxu0 %v466
    %1720 = vmatprep.subr.mxu0 0.0
    %1721 = vmatpush1.msra.mxu0 0.0
    %1722 = vmatprep.subr.mxu0 0.0
    %1723 = vmatpush1.msra.mxu0 0.0
    %1724 = vmatprep.subr.mxu0 0.0
    %1725 = vmatpush1.msra.mxu0 0.0
    %1726 = vmatprep.subr.mxu0 0.0
    %1727 = vmatpush1.msra.mxu0 0.0
    %1728 = vmatprep.subr.mxu0 0.0
    %1729 = vmatpush1.msra.mxu0 0.0
    %1730 = vmatprep.subr.mxu0 0.0
    %1731 = vmatpush1.msra.mxu0 0.0
    %1732 = vmatprep.subr.mxu0 0.0
    %1733 = vmatpush1.msra.mxu0 0.0
    %1734 = vmatprep.subr.mxu0 0.0
    %1735 = vmatpush1.msra.mxu0 0.0
    %1736 = vmatprep.subr.mxu0 0.0
    %1737 = vmatpush1.msra.mxu0 0.0
    %1738 = vmatprep.subr.mxu0 0.0
    %1739 = vmatpush1.msra.mxu0 0.0
    %1740 = vmatprep.subr.mxu0 0.0
    %1741 = vmatpush1.msra.mxu0 0.0
    %1742 = vmatprep.subr.mxu0 0.0
    %1743 = vmatpush1.msra.mxu0 0.0
    %1744 = vmatprep.subr.mxu0 0.0
    %1745 = vmatpush1.msra.mxu0 0.0
    %1746 = vmatprep.subr.mxu0 0.0
    %1747 = vmatpush1.msra.mxu0 0.0
    %1748 = vmatprep.subr.mxu0 0.0
    %1749 = vmatpush1.msra.mxu0 0.0
    %1750 = vmatprep.subr.mxu0 0.0
    %1751 = vmatpush1.msra.mxu0 0.0
    %1752 = vmatprep.mubr.f32.mxu0 0.0
    %1753 = vmatmul.mubr.f32.gmra.mrb[0].mxu0 %v1683
    %v1754 = vpop.f32.mrb[0].mxu0
    %v1755 = vadd.f32 0.0, %v1754
    %v1756 = vpop.f32.mrb[0].mxu0
    %v1757 = vadd.f32 0.0, %v1756
    %1758 = vdwg.mxu0
    %1759 = vmatprep.subr.mxu0 %v409
    %1760 = vmatpush1.msra.mxu0 %v408
    %1761 = vmatprep.subr.mxu0 %v413
    %1762 = vmatpush1.msra.mxu0 %v412
    %1763 = vmatprep.subr.mxu0 %v417
    %1764 = vmatpush1.msra.mxu0 %v416
    %1765 = vmatprep.subr.mxu0 %v421
    %1766 = vmatpush1.msra.mxu0 %v420
    %1767 = vmatprep.subr.mxu0 %v425
    %1768 = vmatpush1.msra.mxu0 %v424
    %1769 = vmatprep.subr.mxu0 %v429
    %1770 = vmatpush1.msra.mxu0 %v428
    %1771 = vmatprep.subr.mxu0 %v433
    %1772 = vmatpush1.msra.mxu0 %v432
    %1773 = vmatprep.subr.mxu0 %v437
    %1774 = vmatpush1.msra.mxu0 %v436
    %1775 = vmatprep.subr.mxu0 %v441
    %1776 = vmatpush1.msra.mxu0 %v440
    %1777 = vmatprep.subr.mxu0 %v445
    %1778 = vmatpush1.msra.mxu0 %v444
    %1779 = vmatprep.subr.mxu0 %v449
    %1780 = vmatpush1.msra.mxu0 %v448
    %1781 = vmatprep.subr.mxu0 %v453
    %1782 = vmatpush1.msra.mxu0 %v452
    %1783 = vmatprep.subr.mxu0 %v457
    %1784 = vmatpush1.msra.mxu0 %v456
    %1785 = vmatprep.subr.mxu0 %v461
    %1786 = vmatpush1.msra.mxu0 %v460
    %1787 = vmatprep.subr.mxu0 %v465
    %1788 = vmatpush1.msra.mxu0 %v464
    %1789 = vmatprep.subr.mxu0 %v469
    %1790 = vmatpush1.msra.mxu0 %v468
    %1791 = vmatprep.subr.mxu0 0.0
    %1792 = vmatpush1.msra.mxu0 0.0
    %1793 = vmatprep.subr.mxu0 0.0
    %1794 = vmatpush1.msra.mxu0 0.0
    %1795 = vmatprep.subr.mxu0 0.0
    %1796 = vmatpush1.msra.mxu0 0.0
    %1797 = vmatprep.subr.mxu0 0.0
    %1798 = vmatpush1.msra.mxu0 0.0
    %1799 = vmatprep.subr.mxu0 0.0
    %1800 = vmatpush1.msra.mxu0 0.0
    %1801 = vmatprep.subr.mxu0 0.0
    %1802 = vmatpush1.msra.mxu0 0.0
    %1803 = vmatprep.subr.mxu0 0.0
    %1804 = vmatpush1.msra.mxu0 0.0
    %1805 = vmatprep.subr.mxu0 0.0
    %1806 = vmatpush1.msra.mxu0 0.0
    %1807 = vmatprep.subr.mxu0 0.0
    %1808 = vmatpush1.msra.mxu0 0.0
    %1809 = vmatprep.subr.mxu0 0.0
    %1810 = vmatpush1.msra.mxu0 0.0
    %1811 = vmatprep.subr.mxu0 0.0
    %1812 = vmatpush1.msra.mxu0 0.0
    %1813 = vmatprep.subr.mxu0 0.0
    %1814 = vmatpush1.msra.mxu0 0.0
    %1815 = vmatprep.subr.mxu0 0.0
    %1816 = vmatpush1.msra.mxu0 0.0
    %1817 = vmatprep.subr.mxu0 0.0
    %1818 = vmatpush1.msra.mxu0 0.0
    %1819 = vmatprep.subr.mxu0 0.0
    %1820 = vmatpush1.msra.mxu0 0.0
    %1821 = vmatprep.subr.mxu0 0.0
    %1822 = vmatpush1.msra.mxu0 0.0
    %1823 = vmatprep.mubr.f32.mxu0 0.0
    %1824 = vmatmul.mubr.f32.gmra.mrb[0].mxu0 %v1683
    %v1825 = vpop.f32.mrb[0].mxu0
    %v1826 = vadd.f32 0.0, %v1825
    %v1827 = vpop.f32.mrb[0].mxu0
    %v1828 = vadd.f32 0.0, %v1827
    %1829 = vdwg.mxu0
    %v1830 = vadd.f32 %v1684, %v1755
    %v1831 = vadd.f32 %v1685, %v1757
    %v1832 = vadd.f32 %v1686, %v1826
    %v1833 = vadd.f32 %v1687, %v1828
    %v1834 = vxor.u32 %v1830, 2147483648
    %v1835 = vmul.f32 %v1834, 1.442695
    %v1836 = vpow.pop %v1835
    %v1837 = vadd.f32 %v1836, 1.0
    %v1838 = vrcp.pop %v1837
    %v1839 = vmul.f32 1.0, %v1838
    %v1840 = vxor.u32 %v1831, 2147483648
    %v1841 = vmul.f32 %v1840, 1.442695
    %v1842 = vpow.pop %v1841
    %v1843 = vadd.f32 %v1842, 1.0
    %v1844 = vrcp.pop %v1843
    %v1845 = vmul.f32 1.0, %v1844
    %v1846 = vtanh.pop %v1832
    %v1847 = vxor.u32 %v1833, 2147483648
    %v1848 = vmul.f32 %v1847, 1.442695
    %v1849 = vpow.pop %v1848
    %v1850 = vadd.f32 %v1849, 1.0
    %v1851 = vrcp.pop %v1850
    %v1852 = vmul.f32 1.0, %v1851
    %v1853 = vmul.f32 %v1845, %v1681
    %v1854 = vmul.f32 %v1839, %v1846
    %v1855 = vadd.f32 %v1853, %v1854
    %v1856 = vtanh.pop %v1855
    %v1857 = vmul.f32 %v1852, %v1856
    %1858 = vst [vmem:[#allocation3] sm:$0xff] %v1857
    %1859 = vst [vmem:[#allocation4] sm:$0xff] %v1855
    // Predicated region
    $region42: #{tpu_custom_call.1} parent=1 // pred_check
      %p1860 = pneg %p65
    $region43: #{tpu_custom_call.1} parent=1 // pred_check_branch
      %1862 = sbr.rel (%p1860) target = $region45
    $region44: #{tpu_custom_call.1} parent=1 // pred_region
      %v1863 = vld [vmem:[#allocation10] sm:$0xff]
      %v1864 = vld [vmem:[#allocation10 + $0x8] sm:$0xff]
      %v1865 = vld [vmem:[#allocation10 + $0x10] sm:$0xff]
      %v1866 = vld [vmem:[#allocation10 + $0x18] sm:$0xff]
      %v1867 = vld [vmem:[#allocation10 + $0x20] sm:$0xff]
      %v1868 = vld [vmem:[#allocation10 + $0x28] sm:$0xff]
      %v1869 = vld [vmem:[#allocation10 + $0x30] sm:$0xff]
      %v1870 = vld [vmem:[#allocation10 + $0x38] sm:$0xff]
      %v1871 = vld [vmem:[#allocation10 + $0x40] sm:$0xff]
      %v1872 = vld [vmem:[#allocation10 + $0x48] sm:$0xff]
      %v1873 = vld [vmem:[#allocation10 + $0x50] sm:$0xff]
      %v1874 = vld [vmem:[#allocation10 + $0x58] sm:$0xff]
      %v1875 = vld [vmem:[#allocation10 + $0x60] sm:$0xff]
      %v1876 = vld [vmem:[#allocation10 + $0x68] sm:$0xff]
      %v1877 = vld [vmem:[#allocation10 + $0x70] sm:$0xff]
      %v1878 = vld [vmem:[#allocation10 + $0x78] sm:$0xff]
      %v1879 = vld [vmem:[%s5] sm:$0x1]
      %v1881 = vlaneseq
      %v1882 = vshrl.u32 %v1881, 7
      %v1883 = vsub.s32 0, %v1882
      %v1884 = vrot.slane %v1879, %v1883
      %1886 = vmatprep.subr.mxu0 0.0
      %1887 = vmatpush1.msra.mxu0 %v1863
      %1888 = vmatprep.subr.mxu0 0.0
      %1889 = vmatpush1.msra.mxu0 %v1864
      %1890 = vmatprep.subr.mxu0 0.0
      %1891 = vmatpush1.msra.mxu0 %v1865
      %1892 = vmatprep.subr.mxu0 0.0
      %1893 = vmatpush1.msra.mxu0 %v1866
      %1894 = vmatprep.subr.mxu0 0.0
      %1895 = vmatpush1.msra.mxu0 %v1867
      %1896 = vmatprep.subr.mxu0 0.0
      %1897 = vmatpush1.msra.mxu0 %v1868
      %1898 = vmatprep.subr.mxu0 0.0
      %1899 = vmatpush1.msra.mxu0 %v1869
      %1900 = vmatprep.subr.mxu0 0.0
      %1901 = vmatpush1.msra.mxu0 %v1870
      %1902 = vmatprep.subr.mxu0 0.0
      %1903 = vmatpush1.msra.mxu0 %v1871
      %1904 = vmatprep.subr.mxu0 0.0
      %1905 = vmatpush1.msra.mxu0 %v1872
      %1906 = vmatprep.subr.mxu0 0.0
      %1907 = vmatpush1.msra.mxu0 %v1873
      %1908 = vmatprep.subr.mxu0 0.0
      %1909 = vmatpush1.msra.mxu0 %v1874
      %1910 = vmatprep.subr.mxu0 0.0
      %1911 = vmatpush1.msra.mxu0 %v1875
      %1912 = vmatprep.subr.mxu0 0.0
      %1913 = vmatpush1.msra.mxu0 %v1876
      %1914 = vmatprep.subr.mxu0 0.0
      %1915 = vmatpush1.msra.mxu0 %v1877
      %1916 = vmatprep.subr.mxu0 0.0
      %1917 = vmatpush1.msra.mxu0 %v1878
      %1918 = vmatprep.subr.mxu0 0.0
      %1919 = vmatpush1.msra.mxu0 0.0
      %1920 = vmatprep.subr.mxu0 0.0
      %1921 = vmatpush1.msra.mxu0 0.0
      %1922 = vmatprep.subr.mxu0 0.0
      %1923 = vmatpush1.msra.mxu0 0.0
      %1924 = vmatprep.subr.mxu0 0.0
      %1925 = vmatpush1.msra.mxu0 0.0
      %1926 = vmatprep.subr.mxu0 0.0
      %1927 = vmatpush1.msra.mxu0 0.0
      %1928 = vmatprep.subr.mxu0 0.0
      %1929 = vmatpush1.msra.mxu0 0.0
      %1930 = vmatprep.subr.mxu0 0.0
      %1931 = vmatpush1.msra.mxu0 0.0
      %1932 = vmatprep.subr.mxu0 0.0
      %1933 = vmatpush1.msra.mxu0 0.0
      %1934 = vmatprep.subr.mxu0 0.0
      %1935 = vmatpush1.msra.mxu0 0.0
      %1936 = vmatprep.subr.mxu0 0.0
      %1937 = vmatpush1.msra.mxu0 0.0
      %1938 = vmatprep.subr.mxu0 0.0
      %1939 = vmatpush1.msra.mxu0 0.0
      %1940 = vmatprep.subr.mxu0 0.0
      %1941 = vmatpush1.msra.mxu0 0.0
      %1942 = vmatprep.subr.mxu0 0.0
      %1943 = vmatpush1.msra.mxu0 0.0
      %1944 = vmatprep.subr.mxu0 0.0
      %1945 = vmatpush1.msra.mxu0 0.0
      %1946 = vmatprep.subr.mxu0 0.0
      %1947 = vmatpush1.msra.mxu0 0.0
      %1948 = vmatprep.subr.mxu0 0.0
      %1949 = vmatpush1.msra.mxu0 0.0
      %1950 = vmatprep.mubr.f32.mxu0 0.0
      %1951 = vmatmul.mubr.f32.gmra.mrb[0].mxu0 %v1857
      %v1952 = vpop.f32.mrb[0].mxu0
      %v1953 = vadd.f32 %v1884, %v1952
      %v1954 = vpop.f32.mrb[0].mxu0
      %1955 = vdwg.mxu0
      %1956 = vst [vmem:[#allocation11] sm:$0xff] %v1953
    $region45: #{tpu_custom_call.1} parent=1 // pred_fallthru
      _
    // Predicated region
    $region46: #{tpu_custom_call.1} parent=1 // pred_check
      _
    $region47: #{tpu_custom_call.1} parent=1 // pred_check_branch
      %1958 = sbr.rel (0) target = $region49
    $region48: #{tpu_custom_call.1} parent=1 // pred_region
      %s1960 = ssub.s32 128, 128
      %1961 = vsyncadd [#allocation7], %s1960
      %s1963 = sshll.u32 [#allocation11], 4
      %s1964 = int_to_ptr.vmem [resolvable:$true] %s1963
      %1966 = dma.vmem_to_hbm [thread:$0]  %s1964, 128, %s6, [#allocation7]
    $region49: #{tpu_custom_call.1} parent=1 // pred_fallthru
      _
    // Predicated region
    $region50: #{tpu_custom_call.1} parent=1 // pred_check
      _
    $region51: #{tpu_custom_call.1} parent=1 // pred_check_branch
      %1968 = sbr.rel (0) target = $region53
    $region52: #{tpu_custom_call.1} parent=1 // pred_region
      %1969 = dma.done [#allocation7], 128
    $region53: #{tpu_custom_call.1} parent=1 // pred_fallthru
      _
    %1970 = vsyncpa [#allocation6], 1
    %1971 = vsyncpa [#allocation9], 1
    %1972 = vsyncpa [#allocation7], 1

</llo_original>
